<compile_context>
chip_gen: v7x
topology: tpu7x:2x2x1
jax: 0.10.0
libtpu: 0.0.40
codegen_flags: <defaults>
</compile_context>

<pallas_src>
import functools

import jax
import jax.numpy as jnp
from jax.experimental import pallas as pl
from jax.experimental.pallas import tpu as pltpu

_MB = 1024 * 1024


def _round_up(x, m):
    return (x + m - 1) // m * m


def _vmem_capacity_bytes():
    """Generation-aware VMEM capacity (v5e/v6e: 128 MiB, v7x: 64 MiB per TC)."""
    try:
        cap = getattr(pltpu.get_tpu_info(), "vmem_capacity_bytes", None)
        if cap:
            return int(cap)
    except Exception:
        pass
    return 64 * _MB            # conservative (v7x per-TensorCore) fallback


def _halo_block_rows(band_h, halo):
    """Smallest divisor of band_h that is >= halo (halo DMA granularity)."""
    for g in range(halo, band_h + 1):
        if band_h % g == 0:
            return g
    return band_h


def _pick_band_height(H, W, cin0p, coutp, dils, halo, in_bytes, cmp_bytes,
                      budget_bytes):
    """Largest divisor of H (>= halo) whose per-step VMEM footprint fits."""

    def step_bytes(th):
        g = _halo_block_rows(th, halo)
        total = 2 * (th + 2 * g) * W * cin0p * in_bytes       # band + halos (x2 buf)
        total += 2 * th * W * coutp * in_bytes                # output band (x2 buf)
        cin, rin = cin0p, th + 2 * halo
        for d in dils:
            rout = rin - 2 * d
            total += rin * W * 3 * cin * cmp_bytes            # folded W-taps
            total += rout * W * coutp * (4 + cmp_bytes)       # f32 acc + activation
            total += 2 * 9 * cin * coutp * cmp_bytes          # weights (x2 buf)
            cin, rin = coutp, rout
        return total

    divisors = [d for d in range(1, H + 1) if H % d == 0 and d >= halo]
    assert divisors, f"need a divisor of H={H} that is >= halo={halo}"
    fitting = [d for d in divisors if step_bytes(d) <= budget_bytes]
    if not fitting:
        return divisors[0]
    th = fitting[-1]
    if th == H:                     # prefer >= 2 bands (pipelining / megacore)
        smaller = [d for d in fitting if d < H]
        if smaller:
            th = smaller[-1]
    return th


def _fused_block_kernel(cur_ref, top_ref, bot_ref, *rest, dils, img_h, width,
                        band_h, halo, n_bands, compute_dtype):
    """One (batch, row-band) step of the fused num_convs x {conv3x3,BN,ReLU}.

    cur_ref: (1, band_h, W, cin0p)   input rows aligned with the output band
    top_ref: (1, g,      W, cin0p)   g >= halo rows ending just above the band
    bot_ref: (1, g,      W, cin0p)   g >= halo rows starting just below it
    rest   : L weight refs (3, 3*cin_p, coutp), sc (L, coutp), bi (L, coutp),
             then the output ref (1, band_h, W, coutp).
    """
    L = len(dils)
    w_refs = rest[:L]
    sc_ref = rest[L]
    bi_ref = rest[L + 1]
    o_ref = rest[L + 2]

    t = pl.program_id(1)
    g = top_ref.shape[1]
    cdt = compute_dtype
    W = width

    # Assemble the H-zero-padded input band in the MXU compute dtype.
    cur = cur_ref[0].astype(cdt)
    top = (top_ref[0, g - halo:g] * (t > 0).astype(top_ref.dtype)).astype(cdt)
    bot = (bot_ref[0, 0:halo] * (t < n_bands - 1).astype(bot_ref.dtype)).astype(cdt)
    x = jnp.concatenate([top, cur, bot], axis=0)     # (band_h + 2*halo, W, cin0p)

    rem = halo
    for l, d in enumerate(dils):
        rows_in, _, cin = x.shape
        rows_out = rows_in - 2 * d
        coutp = w_refs[l].shape[-1]

        # Fold the three W-taps (with their zero borders) into the contraction
        # dim as full-width values -- no per-step masked border stores.
        zcol = jnp.zeros((rows_in, d, cin), cdt)
        left = jnp.concatenate([zcol, x[:, :W - d, :]], axis=1)    # dw = 0
        right = jnp.concatenate([x[:, d:, :], zcol], axis=1)       # dw = 2
        taps = jnp.concatenate([left, x, right], axis=-1)          # (rows_in, W, 3*cin)

        # Three H-taps as chained MXU dots into a single f32 accumulator.
        acc = None
        for dh in range(3):
            lhs = taps[dh * d:dh * d + rows_out].reshape(rows_out * W, 3 * cin)
            part = jnp.dot(lhs, w_refs[l][dh],
                           preferred_element_type=jnp.float32)
            acc = part if acc is None else acc + part

        # Folded BN affine + ReLU (f32 epilogue).
        y = acc * sc_ref[l][None, :] + bi_ref[l][None, :]
        y = jnp.maximum(y, 0.0).reshape(rows_out, W, coutp)

        rem -= d
        if l < L - 1:
            # Rows outside the true image must be zero before the next conv
            # (its zero padding applies to the real feature map, not to values
            # computed from a zero-extended input).
            row0 = t * band_h - rem
            r = jax.lax.broadcasted_iota(jnp.int32, (rows_out, 1, 1), 0) + row0
            y = jnp.where((r >= 0) & (r < img_h), y, 0.0)
            x = y.astype(cdt)
        else:
            o_ref[0] = y.astype(o_ref.dtype)


def basic_conv_block(x_nchw, params, dilation=1, *, compute_dtype=jnp.bfloat16,
                     band_height=None):
    """Forward pass of BasicConvBlock (num_convs x {3x3 conv, BN, ReLU}), fused
    into one pallas_call.  Input/output are NCHW like the PyTorch module."""
    eps = 1e-5
    N, Cin, H, W = x_nchw.shape
    L = len(params)
    Cout = params[-1]["w"].shape[-1]
    dils = tuple(1 if i == 0 else int(dilation) for i in range(L))
    halo = sum(dils)
    assert halo <= H and W > max(dils)

    x = jnp.transpose(x_nchw, (0, 2, 3, 1))                     # NCHW -> NHWC

    # Channel padding: layer-0 input -> multiple of 8 (f32 sublane); outputs ->
    # lane dense (128, or 256 when Cout > 128 to keep the 256-wide MXU N full).
    cin0p = _round_up(Cin, 8)
    coutp = _round_up(Cout, 256) if Cout > 128 else _round_up(Cout, 128)
    if cin0p != Cin:
        x = jnp.pad(x, ((0, 0), (0, 0), (0, 0), (0, cin0p - Cin)))

    # Fold BN into scale/bias; pad + W-tap-fold weights; cast MXU operands.
    w_list, sc_rows, bi_rows = [], [], []
    for i, p in enumerate(params):
        cin = Cin if i == 0 else Cout
        cinp = cin0p if i == 0 else coutp
        w = jnp.pad(p["w"], ((0, 0), (0, 0), (0, cinp - cin), (0, coutp - Cout)))
        w_list.append(w.reshape(3, 3 * cinp, coutp).astype(compute_dtype))
        scale = p["gamma"] / jnp.sqrt(p["var"] + eps)
        bias = p["beta"] - p["mean"] * scale
        sc_rows.append(jnp.pad(scale, (0, coutp - Cout)))
        bi_rows.append(jnp.pad(bias, (0, coutp - Cout)))
    sc = jnp.stack(sc_rows).astype(jnp.float32)                 # (L, coutp)
    bi = jnp.stack(bi_rows).astype(jnp.float32)                 # (L, coutp)

    # Generation-aware VMEM budget (v5e/v6e: 128 MiB, v7x: 64 MiB per core).
    cap = _vmem_capacity_bytes()
    vmem_limit = max(32 * _MB, min(96 * _MB, cap - 16 * _MB))
    band_budget = min(int(0.55 * cap), 40 * _MB)

    in_bytes = jnp.dtype(x.dtype).itemsize
    cmp_bytes = jnp.dtype(compute_dtype).itemsize
    TH = band_height or _pick_band_height(H, W, cin0p, coutp, dils, halo,
                                          in_bytes, cmp_bytes, band_budget)
    assert H % TH == 0 and TH >= halo
    T = H // TH
    g = _halo_block_rows(TH, halo)
    thg, nhb = TH // g, H // g

    kernel = functools.partial(
        _fused_block_kernel, dils=dils, img_h=H, width=W, band_h=TH,
        halo=halo, n_bands=T, compute_dtype=compute_dtype)

    in_specs = [
        # current output-aligned row band of the input
        pl.BlockSpec((1, TH, W, cin0p), lambda n, t: (n, t, 0, 0)),
        # g rows ending just above the band (clamped at the top edge)
        pl.BlockSpec((1, g, W, cin0p),
                     lambda n, t: (n, jnp.maximum(t * thg - 1, 0), 0, 0)),
        # g rows starting just below the band (clamped at the bottom edge)
        pl.BlockSpec((1, g, W, cin0p),
                     lambda n, t: (n, jnp.minimum((t + 1) * thg, nhb - 1), 0, 0)),
    ]
    for wl in w_list:                                # grid-invariant operands
        in_specs.append(pl.BlockSpec(wl.shape, lambda n, t: (0, 0, 0)))
    in_specs.append(pl.BlockSpec(sc.shape, lambda n, t: (0, 0)))
    in_specs.append(pl.BlockSpec(bi.shape, lambda n, t: (0, 0)))

    out = pl.pallas_call(
        kernel,
        out_shape=jax.ShapeDtypeStruct((N, H, W, coutp), x.dtype),
        grid_spec=pltpu.PrefetchScalarGridSpec(
            num_scalar_prefetch=0,
            grid=(N, T),
            in_specs=in_specs,
            out_specs=pl.BlockSpec((1, TH, W, coutp), lambda n, t: (n, t, 0, 0)),
        ),
        compiler_params=pltpu.CompilerParams(
            dimension_semantics=("parallel", "parallel"),
            vmem_limit_bytes=vmem_limit),
    )(x, x, x, *w_list, sc, bi)

    out = out[..., :Cout]                            # drop lane padding once
    return jnp.transpose(out, (0, 3, 1, 2))          # NHWC -> NCHW


def init_basic_conv_block_params(key, in_channels, out_channels, num_convs=2):
    """Deterministic synthetic parameters matching BasicConvBlock's shapes."""
    params = []
    for i in range(num_convs):
        cin = in_channels if i == 0 else out_channels
        key, k1, k2, k3, k4, k5 = jax.random.split(key, 6)
        params.append(dict(
            # HWIO conv weight (PyTorch's OIHW (Cout,Cin,3,3) transposed)
            w=0.1 * jax.random.normal(k1, (3, 3, cin, out_channels), jnp.float32),
            gamma=1.0 + 0.1 * jax.random.normal(k2, (out_channels,), jnp.float32),
            beta=0.1 * jax.random.normal(k3, (out_channels,), jnp.float32),
            mean=0.1 * jax.random.normal(k4, (out_channels,), jnp.float32),
            var=0.5 + jnp.abs(jax.random.normal(k5, (out_channels,), jnp.float32)),
        ))
    return params


def _reference(x_nchw, params, dilation=1, compute_dtype=jnp.float32):
    """Pure-JAX reference (lax conv) with matching operand precision."""
    eps = 1e-5
    x = x_nchw
    for i, p in enumerate(params):
        dil = 1 if i == 0 else dilation
        w_oihw = jnp.transpose(p["w"], (3, 2, 0, 1))
        y = jax.lax.conv_general_dilated(
            x.astype(compute_dtype), w_oihw.astype(compute_dtype),
            window_strides=(1, 1), padding=((dil, dil), (dil, dil)),
            rhs_dilation=(dil, dil),
            dimension_numbers=("NCHW", "OIHW", "NCHW"),
            preferred_element_type=jnp.float32)
        scale = p["gamma"] / jnp.sqrt(p["var"] + eps)
        bias = p["beta"] - p["mean"] * scale
        y = y * scale[None, :, None, None] + bias[None, :, None, None]
        x = jnp.maximum(y, 0.0).astype(jnp.float32)
    return x


if __name__ == "__main__":
    key = jax.random.PRNGKey(0)
    kx, kp = jax.random.split(key)

    in_channels, out_channels, num_convs = 4, 8, 2
    x = jax.random.normal(kx, (2, in_channels, 16, 16), jnp.float32)  # NCHW
    params = init_basic_conv_block_params(kp, in_channels, out_channels,
                                          num_convs=num_convs)

    # Strict f32-MXU path (validation), dilation = 1.
    out = jax.block_until_ready(
        basic_conv_block(x, params, dilation=1, compute_dtype=jnp.float32))
    ref = jax.block_until_ready(_reference(x, params, dilation=1,
                                           compute_dtype=jnp.float32))
    assert out.shape == ref.shape, (out.shape, ref.shape)
    assert jnp.allclose(out, ref, atol=1e-3, rtol=1e-3), "mismatch (f32 path)"

    # Default bf16-MXU / f32-accumulate path, dilation = 1 and 2.
    for dil in (1, 2):
        out_bf = jax.block_until_ready(basic_conv_block(x, params, dilation=dil))
        ref_bf = jax.block_until_ready(_reference(x, params, dilation=dil,
                                                  compute_dtype=jnp.bfloat16))
        assert out_bf.shape == ref_bf.shape
        assert jnp.allclose(out_bf, ref_bf, atol=1e-2, rtol=1e-2), \
            f"mismatch (bf16 path, dilation={dil})"

    print("KERNEL_OK")
</pallas_src>

<mosaic_0001>
module attributes {stable_mosaic.version = 11 : i64} {
  func.func @_fused_block_kernel(%arg0: i32, %arg1: i32, %arg2: memref<1x8x16x8xf32, #tpu.memory_space<vmem>>, %arg3: memref<1x2x16x8xf32, #tpu.memory_space<vmem>>, %arg4: memref<1x2x16x8xf32, #tpu.memory_space<vmem>>, %arg5: memref<3x24x128xf32, #tpu.memory_space<vmem>>, %arg6: memref<3x384x128xf32, #tpu.memory_space<vmem>>, %arg7: memref<2x128xf32, #tpu.memory_space<vmem>>, %arg8: memref<2x128xf32, #tpu.memory_space<vmem>>, %arg9: memref<1x8x16x128xf32, #tpu.memory_space<vmem>>) attributes {dimension_semantics = [#tpu.dimension_semantics<parallel>, #tpu.dimension_semantics<parallel>], iteration_bounds = array<i64: 2, 2>, scalar_prefetch = 0 : i64, scratch_operands = 0 : i64, tpu.core_type = #tpu.core_type<tc>, window_params = [{transform_indices = @transform_0, window_bounds = array<i64: 1, 8, 16, 8>}, {transform_indices = @transform_1, window_bounds = array<i64: 1, 2, 16, 8>}, {transform_indices = @transform_2, window_bounds = array<i64: 1, 2, 16, 8>}, {pipeline_mode = #tpu.pipeline_mode<synchronous>, transform_indices = @transform_3, window_bounds = array<i64: 3, 24, 128>}, {pipeline_mode = #tpu.pipeline_mode<synchronous>, transform_indices = @transform_4, window_bounds = array<i64: 3, 384, 128>}, {pipeline_mode = #tpu.pipeline_mode<synchronous>, transform_indices = @transform_5, window_bounds = array<i64: 2, 128>}, {pipeline_mode = #tpu.pipeline_mode<synchronous>, transform_indices = @transform_6, window_bounds = array<i64: 2, 128>}, {transform_indices = @transform_7, window_bounds = array<i64: 1, 8, 16, 128>}]} {
    %c0 = arith.constant 0 : index
    %c0_0 = arith.constant 0 : index
    %c0_1 = arith.constant 0 : index
    %c0_2 = arith.constant 0 : index
    %0 = vector.load %arg2[%c0, %c0_0, %c0_1, %c0_2] : memref<1x8x16x8xf32, #tpu.memory_space<vmem>>, vector<1x8x16x8xf32>
    %1 = vector.shape_cast %0 : vector<1x8x16x8xf32> to vector<8x16x8xf32>
    %c0_3 = arith.constant 0 : index
    %c0_4 = arith.constant 0 : index
    %c0_5 = arith.constant 0 : index
    %c0_6 = arith.constant 0 : index
    %2 = vector.load %arg3[%c0_3, %c0_4, %c0_5, %c0_6] : memref<1x2x16x8xf32, #tpu.memory_space<vmem>>, vector<1x2x16x8xf32>
    %3 = vector.shape_cast %2 : vector<1x2x16x8xf32> to vector<2x16x8xf32>
    %c0_i32 = arith.constant 0 : i32
    %4 = arith.cmpi sgt, %arg1, %c0_i32 : i32
    %5 = arith.extui %4 : i1 to i32
    %6 = arith.sitofp %5 : i32 to f32
    %7 = vector.broadcast %6 : f32 to vector<2x16x8xf32>
    %8 = arith.mulf %3, %7 : vector<2x16x8xf32>
    %c0_7 = arith.constant 0 : index
    %c0_8 = arith.constant 0 : index
    %c0_9 = arith.constant 0 : index
    %c0_10 = arith.constant 0 : index
    %9 = vector.load %arg4[%c0_7, %c0_8, %c0_9, %c0_10] : memref<1x2x16x8xf32, #tpu.memory_space<vmem>>, vector<1x2x16x8xf32>
    %10 = vector.shape_cast %9 : vector<1x2x16x8xf32> to vector<2x16x8xf32>
    %c1_i32 = arith.constant 1 : i32
    %11 = arith.cmpi slt, %arg1, %c1_i32 : i32
    %12 = arith.extui %11 : i1 to i32
    %13 = arith.sitofp %12 : i32 to f32
    %14 = vector.broadcast %13 : f32 to vector<2x16x8xf32>
    %15 = arith.mulf %10, %14 : vector<2x16x8xf32>
    %16 = tpu.concatenate %8, %1, %15 in 0 : vector<2x16x8xf32>, vector<8x16x8xf32>, vector<2x16x8xf32> -> vector<12x16x8xf32>
    %cst = arith.constant 0.000000e+00 : f32
    %17 = vector.broadcast %cst : f32 to vector<12x1x8xf32>
    %18 = vector.extract_strided_slice %16 {offsets = [0, 0, 0], sizes = [12, 15, 8], strides = [1, 1, 1]} : vector<12x16x8xf32> to vector<12x15x8xf32>
    %19 = tpu.concatenate %17, %18 in 1 : vector<12x1x8xf32>, vector<12x15x8xf32> -> vector<12x16x8xf32>
    %20 = vector.extract_strided_slice %16 {offsets = [0, 1, 0], sizes = [12, 15, 8], strides = [1, 1, 1]} : vector<12x16x8xf32> to vector<12x15x8xf32>
    %21 = tpu.concatenate %20, %17 in 1 : vector<12x15x8xf32>, vector<12x1x8xf32> -> vector<12x16x8xf32>
    %22 = tpu.concatenate %19, %16, %21 in 2 : vector<12x16x8xf32>, vector<12x16x8xf32>, vector<12x16x8xf32> -> vector<12x16x24xf32>
    %23 = vector.extract_strided_slice %22 {offsets = [0, 0, 0], sizes = [10, 16, 24], strides = [1, 1, 1]} : vector<12x16x24xf32> to vector<10x16x24xf32>
    %24 = vector.shape_cast %23 : vector<10x16x24xf32> to vector<160x24xf32>
    %c0_11 = arith.constant 0 : index
    %c0_12 = arith.constant 0 : index
    %c0_13 = arith.constant 0 : index
    %25 = vector.load %arg5[%c0_11, %c0_12, %c0_13] : memref<3x24x128xf32, #tpu.memory_space<vmem>>, vector<1x24x128xf32>
    %26 = vector.shape_cast %25 : vector<1x24x128xf32> to vector<24x128xf32>
    %cst_14 = arith.constant dense<0.000000e+00> : vector<160x128xf32>
    %27 = tpu.matmul %24, %26, %cst_14 {dimension_numbers = #tpu.dot_dimension_numbers<[1], [0], [0], [1], [0, 0, 1, 1], [], []>} : vector<160x24xf32>, vector<24x128xf32>, vector<160x128xf32> -> vector<160x128xf32>
    %28 = vector.extract_strided_slice %22 {offsets = [1, 0, 0], sizes = [10, 16, 24], strides = [1, 1, 1]} : vector<12x16x24xf32> to vector<10x16x24xf32>
    %29 = vector.shape_cast %28 : vector<10x16x24xf32> to vector<160x24xf32>
    %c1 = arith.constant 1 : index
    %c0_15 = arith.constant 0 : index
    %c0_16 = arith.constant 0 : index
    %30 = vector.load %arg5[%c1, %c0_15, %c0_16] : memref<3x24x128xf32, #tpu.memory_space<vmem>>, vector<1x24x128xf32>
    %31 = vector.shape_cast %30 : vector<1x24x128xf32> to vector<24x128xf32>
    %cst_17 = arith.constant dense<0.000000e+00> : vector<160x128xf32>
    %32 = tpu.matmul %29, %31, %cst_17 {dimension_numbers = #tpu.dot_dimension_numbers<[1], [0], [0], [1], [0, 0, 1, 1], [], []>} : vector<160x24xf32>, vector<24x128xf32>, vector<160x128xf32> -> vector<160x128xf32>
    %33 = arith.addf %27, %32 : vector<160x128xf32>
    %34 = vector.extract_strided_slice %22 {offsets = [2, 0, 0], sizes = [10, 16, 24], strides = [1, 1, 1]} : vector<12x16x24xf32> to vector<10x16x24xf32>
    %35 = vector.shape_cast %34 : vector<10x16x24xf32> to vector<160x24xf32>
    %c2 = arith.constant 2 : index
    %c0_18 = arith.constant 0 : index
    %c0_19 = arith.constant 0 : index
    %36 = vector.load %arg5[%c2, %c0_18, %c0_19] : memref<3x24x128xf32, #tpu.memory_space<vmem>>, vector<1x24x128xf32>
    %37 = vector.shape_cast %36 : vector<1x24x128xf32> to vector<24x128xf32>
    %cst_20 = arith.constant dense<0.000000e+00> : vector<160x128xf32>
    %38 = tpu.matmul %35, %37, %cst_20 {dimension_numbers = #tpu.dot_dimension_numbers<[1], [0], [0], [1], [0, 0, 1, 1], [], []>} : vector<160x24xf32>, vector<24x128xf32>, vector<160x128xf32> -> vector<160x128xf32>
    %39 = arith.addf %33, %38 : vector<160x128xf32>
    %c0_21 = arith.constant 0 : index
    %c0_22 = arith.constant 0 : index
    %40 = vector.load %arg7[%c0_21, %c0_22] : memref<2x128xf32, #tpu.memory_space<vmem>>, vector<1x128xf32>
    %41 = vector.shape_cast %40 : vector<1x128xf32> to vector<128xf32>
    %42 = vector.shape_cast %41 : vector<128xf32> to vector<1x128xf32>
    %43 = vector.broadcast %42 : vector<1x128xf32> to vector<160x128xf32>
    %44 = arith.mulf %39, %43 : vector<160x128xf32>
    %c0_23 = arith.constant 0 : index
    %c0_24 = arith.constant 0 : index
    %45 = vector.load %arg8[%c0_23, %c0_24] : memref<2x128xf32, #tpu.memory_space<vmem>>, vector<1x128xf32>
    %46 = vector.shape_cast %45 : vector<1x128xf32> to vector<128xf32>
    %47 = vector.shape_cast %46 : vector<128xf32> to vector<1x128xf32>
    %48 = vector.broadcast %47 : vector<1x128xf32> to vector<160x128xf32>
    %49 = arith.addf %44, %48 : vector<160x128xf32>
    %cst_25 = arith.constant 0.000000e+00 : f32
    %50 = vector.broadcast %cst_25 : f32 to vector<160x128xf32>
    %51 = arith.maximumf %49, %50 : vector<160x128xf32>
    %52 = vector.shape_cast %51 : vector<160x128xf32> to vector<10x16x128xf32>
    %c8_i32 = arith.constant 8 : i32
    %53 = arith.muli %arg1, %c8_i32 : i32
    %c1_i32_26 = arith.constant 1 : i32
    %54 = arith.subi %53, %c1_i32_26 : i32
    %55 = tpu.iota {dimensions = array<i32: 0>} : vector<10x1x1xi32>
    %56 = vector.broadcast %54 : i32 to vector<10x1x1xi32>
    %57 = arith.addi %55, %56 : vector<10x1x1xi32>
    %c0_i32_27 = arith.constant 0 : i32
    %58 = vector.broadcast %c0_i32_27 : i32 to vector<10x1x1xi32>
    %59 = arith.cmpi sge, %57, %58 : vector<10x1x1xi32>
    %c16_i32 = arith.constant 16 : i32
    %60 = vector.broadcast %c16_i32 : i32 to vector<10x1x1xi32>
    %61 = arith.cmpi slt, %57, %60 : vector<10x1x1xi32>
    %62 = arith.andi %59, %61 : vector<10x1x1xi1>
    %cst_28 = arith.constant 0.000000e+00 : f32
    %63 = vector.shape_cast %62 : vector<10x1x1xi1> to vector<10x1x1xi1>
    %64 = vector.broadcast %63 : vector<10x1x1xi1> to vector<10x16x128xi1>
    %65 = vector.broadcast %cst_28 : f32 to vector<10x16x128xf32>
    %66 = arith.select %64, %52, %65 : vector<10x16x128xi1>, vector<10x16x128xf32>
    %cst_29 = arith.constant 0.000000e+00 : f32
    %67 = vector.broadcast %cst_29 : f32 to vector<10x1x128xf32>
    %68 = vector.extract_strided_slice %66 {offsets = [0, 0, 0], sizes = [10, 15, 128], strides = [1, 1, 1]} : vector<10x16x128xf32> to vector<10x15x128xf32>
    %69 = tpu.concatenate %67, %68 in 1 : vector<10x1x128xf32>, vector<10x15x128xf32> -> vector<10x16x128xf32>
    %70 = vector.extract_strided_slice %66 {offsets = [0, 1, 0], sizes = [10, 15, 128], strides = [1, 1, 1]} : vector<10x16x128xf32> to vector<10x15x128xf32>
    %71 = tpu.concatenate %70, %67 in 1 : vector<10x15x128xf32>, vector<10x1x128xf32> -> vector<10x16x128xf32>
    %72 = tpu.concatenate %69, %66, %71 in 2 : vector<10x16x128xf32>, vector<10x16x128xf32>, vector<10x16x128xf32> -> vector<10x16x384xf32>
    %73 = vector.extract_strided_slice %72 {offsets = [0, 0, 0], sizes = [8, 16, 384], strides = [1, 1, 1]} : vector<10x16x384xf32> to vector<8x16x384xf32>
    %74 = vector.shape_cast %73 : vector<8x16x384xf32> to vector<128x384xf32>
    %c0_30 = arith.constant 0 : index
    %c0_31 = arith.constant 0 : index
    %c0_32 = arith.constant 0 : index
    %75 = vector.load %arg6[%c0_30, %c0_31, %c0_32] : memref<3x384x128xf32, #tpu.memory_space<vmem>>, vector<1x384x128xf32>
    %76 = vector.shape_cast %75 : vector<1x384x128xf32> to vector<384x128xf32>
    %cst_33 = arith.constant dense<0.000000e+00> : vector<128x128xf32>
    %77 = tpu.matmul %74, %76, %cst_33 {dimension_numbers = #tpu.dot_dimension_numbers<[1], [0], [0], [1], [0, 0, 1, 1], [], []>} : vector<128x384xf32>, vector<384x128xf32>, vector<128x128xf32> -> vector<128x128xf32>
    %78 = vector.extract_strided_slice %72 {offsets = [1, 0, 0], sizes = [8, 16, 384], strides = [1, 1, 1]} : vector<10x16x384xf32> to vector<8x16x384xf32>
    %79 = vector.shape_cast %78 : vector<8x16x384xf32> to vector<128x384xf32>
    %c1_34 = arith.constant 1 : index
    %c0_35 = arith.constant 0 : index
    %c0_36 = arith.constant 0 : index
    %80 = vector.load %arg6[%c1_34, %c0_35, %c0_36] : memref<3x384x128xf32, #tpu.memory_space<vmem>>, vector<1x384x128xf32>
    %81 = vector.shape_cast %80 : vector<1x384x128xf32> to vector<384x128xf32>
    %cst_37 = arith.constant dense<0.000000e+00> : vector<128x128xf32>
    %82 = tpu.matmul %79, %81, %cst_37 {dimension_numbers = #tpu.dot_dimension_numbers<[1], [0], [0], [1], [0, 0, 1, 1], [], []>} : vector<128x384xf32>, vector<384x128xf32>, vector<128x128xf32> -> vector<128x128xf32>
    %83 = arith.addf %77, %82 : vector<128x128xf32>
    %84 = vector.extract_strided_slice %72 {offsets = [2, 0, 0], sizes = [8, 16, 384], strides = [1, 1, 1]} : vector<10x16x384xf32> to vector<8x16x384xf32>
    %85 = vector.shape_cast %84 : vector<8x16x384xf32> to vector<128x384xf32>
    %c2_38 = arith.constant 2 : index
    %c0_39 = arith.constant 0 : index
    %c0_40 = arith.constant 0 : index
    %86 = vector.load %arg6[%c2_38, %c0_39, %c0_40] : memref<3x384x128xf32, #tpu.memory_space<vmem>>, vector<1x384x128xf32>
    %87 = vector.shape_cast %86 : vector<1x384x128xf32> to vector<384x128xf32>
    %cst_41 = arith.constant dense<0.000000e+00> : vector<128x128xf32>
    %88 = tpu.matmul %85, %87, %cst_41 {dimension_numbers = #tpu.dot_dimension_numbers<[1], [0], [0], [1], [0, 0, 1, 1], [], []>} : vector<128x384xf32>, vector<384x128xf32>, vector<128x128xf32> -> vector<128x128xf32>
    %89 = arith.addf %83, %88 : vector<128x128xf32>
    %c1_42 = arith.constant 1 : index
    %c0_43 = arith.constant 0 : index
    %90 = vector.load %arg7[%c1_42, %c0_43] : memref<2x128xf32, #tpu.memory_space<vmem>>, vector<1x128xf32>
    %91 = vector.shape_cast %90 : vector<1x128xf32> to vector<128xf32>
    %92 = vector.shape_cast %91 : vector<128xf32> to vector<1x128xf32>
    %93 = vector.broadcast %92 : vector<1x128xf32> to vector<128x128xf32>
    %94 = arith.mulf %89, %93 : vector<128x128xf32>
    %c1_44 = arith.constant 1 : index
    %c0_45 = arith.constant 0 : index
    %95 = vector.load %arg8[%c1_44, %c0_45] : memref<2x128xf32, #tpu.memory_space<vmem>>, vector<1x128xf32>
    %96 = vector.shape_cast %95 : vector<1x128xf32> to vector<128xf32>
    %97 = vector.shape_cast %96 : vector<128xf32> to vector<1x128xf32>
    %98 = vector.broadcast %97 : vector<1x128xf32> to vector<128x128xf32>
    %99 = arith.addf %94, %98 : vector<128x128xf32>
    %cst_46 = arith.constant 0.000000e+00 : f32
    %100 = vector.broadcast %cst_46 : f32 to vector<128x128xf32>
    %101 = arith.maximumf %99, %100 : vector<128x128xf32>
    %102 = vector.shape_cast %101 : vector<128x128xf32> to vector<8x16x128xf32>
    %c0_47 = arith.constant 0 : index
    %c0_48 = arith.constant 0 : index
    %c0_49 = arith.constant 0 : index
    %c0_50 = arith.constant 0 : index
    %103 = vector.load %arg9[%c0_47, %c0_48, %c0_49, %c0_50] : memref<1x8x16x128xf32, #tpu.memory_space<vmem>>, vector<1x8x16x128xf32>
    %104 = vector.shape_cast %103 : vector<1x8x16x128xf32> to vector<8x16x128xf32>
    %105 = vector.shape_cast %102 : vector<8x16x128xf32> to vector<1x8x16x128xf32>
    tpu.vector_store %arg9[%c0_47, %c0_48, %c0_49, %c0_50], %105 {strides = array<i32>} : memref<1x8x16x128xf32, #tpu.memory_space<vmem>>, vector<1x8x16x128xf32>,
    return
  }
  func.func @transform_0(%arg0: i32, %arg1: i32) -> (i32, i32, i32, i32) {
    %c0_i32 = arith.constant 0 : i32
    %c0_i32_0 = arith.constant 0 : i32
    %c0_i32_1 = arith.constant 0 : i32
    return %arg0, %arg1, %c0_i32, %c0_i32_0 : i32, i32, i32, i32
  }
  func.func @transform_1(%arg0: i32, %arg1: i32) -> (i32, i32, i32, i32) {
    %c4_i32 = arith.constant 4 : i32
    %0 = arith.muli %arg1, %c4_i32 : i32
    %c1_i32 = arith.constant 1 : i32
    %1 = arith.subi %0, %c1_i32 : i32
    %c0_i32 = arith.constant 0 : i32
    %2 = arith.maxsi %1, %c0_i32 : i32
    %c0_i32_0 = arith.constant 0 : i32
    %c0_i32_1 = arith.constant 0 : i32
    %c0_i32_2 = arith.constant 0 : i32
    return %arg0, %2, %c0_i32_0, %c0_i32_1 : i32, i32, i32, i32
  }
  func.func @transform_2(%arg0: i32, %arg1: i32) -> (i32, i32, i32, i32) {
    %c1_i32 = arith.constant 1 : i32
    %0 = arith.addi %arg1, %c1_i32 : i32
    %c4_i32 = arith.constant 4 : i32
    %1 = arith.muli %0, %c4_i32 : i32
    %c7_i32 = arith.constant 7 : i32
    %2 = arith.minsi %1, %c7_i32 : i32
    %c0_i32 = arith.constant 0 : i32
    %c0_i32_0 = arith.constant 0 : i32
    %c0_i32_1 = arith.constant 0 : i32
    return %arg0, %2, %c0_i32, %c0_i32_0 : i32, i32, i32, i32
  }
  func.func @transform_3(%arg0: i32, %arg1: i32) -> (i32, i32, i32) {
    %c0_i32 = arith.constant 0 : i32
    %c0_i32_0 = arith.constant 0 : i32
    %c0_i32_1 = arith.constant 0 : i32
    %c0_i32_2 = arith.constant 0 : i32
    return %c0_i32, %c0_i32_0, %c0_i32_1 : i32, i32, i32
  }
  func.func @transform_4(%arg0: i32, %arg1: i32) -> (i32, i32, i32) {
    %c0_i32 = arith.constant 0 : i32
    %c0_i32_0 = arith.constant 0 : i32
    %c0_i32_1 = arith.constant 0 : i32
    %c0_i32_2 = arith.constant 0 : i32
    return %c0_i32, %c0_i32_0, %c0_i32_1 : i32, i32, i32
  }
  func.func @transform_5(%arg0: i32, %arg1: i32) -> (i32, i32) {
    %c0_i32 = arith.constant 0 : i32
    %c0_i32_0 = arith.constant 0 : i32
    %c0_i32_1 = arith.constant 0 : i32
    return %c0_i32, %c0_i32_0 : i32, i32
  }
  func.func @transform_6(%arg0: i32, %arg1: i32) -> (i32, i32) {
    %c0_i32 = arith.constant 0 : i32
    %c0_i32_0 = arith.constant 0 : i32
    %c0_i32_1 = arith.constant 0 : i32
    return %c0_i32, %c0_i32_0 : i32, i32
  }
  func.func @transform_7(%arg0: i32, %arg1: i32) -> (i32, i32, i32, i32) {
    %c0_i32 = arith.constant 0 : i32
    %c0_i32_0 = arith.constant 0 : i32
    %c0_i32_1 = arith.constant 0 : i32
    return %arg0, %arg1, %c0_i32, %c0_i32_0 : i32, i32, i32, i32
  }
}

</mosaic_0001>

<llo_original>
// kernel: tpu_custom_call.1
$region0: #{tpu_custom_call.1}
  #allocation0 [shape = 'u32[]', space=smem, size = 0x4, offset = 0x4, fixed_abs, tag = 'smem constant byte address 0x4 - core index']
  #allocation1 [shape = 'u32[144,128]{1,0:T(1,128)}', space=vmem, size = 0x12000, scoped, tag = 'internal scratch']
  %s0 = inlined_call_operand.vmem [shape: f32[2,16,16,8], index: 0, kind: input, shape index: {}]
  %s1 = inlined_call_operand.vmem [shape: f32[2,16,16,8], index: 1, kind: input, shape index: {}]
  %s2 = inlined_call_operand.vmem [shape: f32[2,16,16,8], index: 2, kind: input, shape index: {}]
  %s3 = inlined_call_operand.vmem [shape: f32[3,24,128], index: 3, kind: input, shape index: {}]
  %s4 = inlined_call_operand.vmem [shape: f32[3,384,128], index: 4, kind: input, shape index: {}]
  %s5 = inlined_call_operand.vmem [shape: f32[2,128], index: 5, kind: input, shape index: {}]
  %s6 = inlined_call_operand.vmem [shape: f32[2,128], index: 6, kind: input, shape index: {}]
  %s7 = inlined_call_operand.hbm [shape: f32[2,16,16,128], index: 7, kind: output, shape index: {}]
  %s8 = sld [smem:[#allocation0]]
  $region61: #{tpu_custom_call.1} parent=0
    _
  %s10 = ssub.s32 1, %s8
  %s11 = scalar_select 0, %s10, %s8
  $region1: #{tpu_custom_call.1} parent=0
    #allocation2 [shape = 'u8[131072]{0}', space=vmem, size = 0x20000, scoped, tag = 'output window, operand 0']
    #allocation3 [shape = 's32[2]{0}', space=sflag, size = 0x8, scoped, tag = 'scoped memory for tpu_custom_call.1']
    %12 = vsyncpa [#allocation3], 0
    %s13 = scalar_lea.sflag [#allocation3], 1
    %14 = vsyncpa %s13, 0
    loop: start=0, step=1, limit=6
    $region2: #{tpu_custom_call.1} parent=1 // loop_pre_header
      _
    $region3: #{tpu_custom_call.1} parent=1 // loop_header
      %s16 = sphi 0, %s20
      %p17 = scmp.ge.s32.totalorder %s16, 6
      %s23 = sphi 0, %s35
      %s24 = sphi 0, %s31
      %s25 = sphi 0, %s23
      %s26 = sphi 0, %s24
      %s27 = sphi 0, %s25
      %s28 = sphi 0, %s26
      %s40 = sphi 0, %s42
      %s43 = sphi 0, %s40
      %s44 = sphi 0, %s43
      %s60 = sphi 0, %s44
      %s76 = sphi 0, %s78
      %s79 = sphi 0, %s76
      %s80 = sphi 0, %s79
      %s96 = sphi 0, %s80
      %s112 = sphi 0, %s114
      %s115 = sphi 0, %s112
      %s116 = sphi 0, %s115
      %s132 = sphi 0, %s116
      %s136 = sphi 0, %s136
      %s138 = sphi 0, %s136
      %s139 = sphi 0, %s138
      %s153 = sphi 0, %s139
      %s157 = sphi 0, %s157
      %s159 = sphi 0, %s157
      %s160 = sphi 0, %s159
      %s174 = sphi 0, %s160
      %s178 = sphi 0, %s178
      %s180 = sphi 0, %s178
      %s181 = sphi 0, %s180
      %s195 = sphi 0, %s181
      %s199 = sphi 0, %s199
      %s201 = sphi 0, %s199
      %s202 = sphi 0, %s201
      %s216 = sphi 0, %s202
      %s224 = sphi 0, %s226
      %s227 = sphi 0, %s224
      %s228 = sphi 0, %s227
      %s244 = sphi 0, %s228
    $region4: #{tpu_custom_call.1} parent=1 // loop_header_branch
      %19 = sbr.rel (%p17) target = $region8
    $region5: #{tpu_custom_call.1} parent=1 // loop_body
      %s21 = ssub.s32 %s16, 1
      %s22 = ssub.s32 %s16, 2
      %s29 = sadd.s32 1, %s24
      %p30 = scmp.ge.s32.totalorder %s29, 2
      %s31 = scalar_select %p30, 0, %s29
      %s32 = sadd.s32 1, %s23
      %s33 = scalar_select %p30, %s32, %s23
      %p34 = scmp.ge.s32.totalorder %s33, 2
      %s35 = scalar_select %p34, 0, %s33
      %s36 = ssub.s32 %s23, %s35
      %s37 = ssub.s32 %s24, %s31
      %s38 = sor.u32 %s36, %s37
      %p39 = scmp.eq.s32.totalorder %s38, 0
      %s41 = sadd.s32 %s40, 1
      %s42 = scalar_select %p39, %s40, %s41
      %p45 = pneg %p39
      %p46 = scmp.eq.s32.totalorder %s16, 3
      %p47 = por %p45, %p46
      %p48 = scmp.ne.s32.totalorder %s40, %s43
      %p49 = scmp.eq.s32.totalorder %s16, 0
      %p50 = por %p48, %p49
      %p51 = scmp.ne.s32.totalorder %s40, %s43
      %p52 = scmp.eq.s32.totalorder %s21, 3
      %p53 = por %p51, %p52
      %p54 = scmp.ne.s32.totalorder %s43, %s44
      %p55 = scmp.eq.s32.totalorder %s21, 0
      %p56 = por %p54, %p55
      %p57 = scmp.ne.s32.totalorder %s43, %s44
      %p58 = scmp.eq.s32.totalorder %s22, 3
      %p59 = por %p57, %p58
      %p61 = scmp.ne.s32.totalorder %s44, %s60
      %p62 = scmp.eq.s32.totalorder %s22, 0
      %p63 = por %p61, %p62
      %s64 = smul.u32 %s24, 4
      %s65 = ssub.s32 %s64, 1
      %p66 = scmp.gt.s32.totalorder %s65, 0
      %s67 = scalar_select %p66, %s65, 0
      %s68 = smul.u32 %s31, 4
      %s69 = ssub.s32 %s68, 1
      %p70 = scmp.gt.s32.totalorder %s69, 0
      %s71 = scalar_select %p70, %s69, 0
      %s72 = ssub.s32 %s23, %s35
      %s73 = ssub.s32 %s67, %s71
      %s74 = sor.u32 %s72, %s73
      %p75 = scmp.eq.s32.totalorder %s74, 0
      %s77 = sadd.s32 %s76, 1
      %s78 = scalar_select %p75, %s76, %s77
      %p81 = pneg %p75
      %p82 = scmp.eq.s32.totalorder %s16, 3
      %p83 = por %p81, %p82
      %p84 = scmp.ne.s32.totalorder %s76, %s79
      %p85 = scmp.eq.s32.totalorder %s16, 0
      %p86 = por %p84, %p85
      %p87 = scmp.ne.s32.totalorder %s76, %s79
      %p88 = scmp.eq.s32.totalorder %s21, 3
      %p89 = por %p87, %p88
      %p90 = scmp.ne.s32.totalorder %s79, %s80
      %p91 = scmp.eq.s32.totalorder %s21, 0
      %p92 = por %p90, %p91
      %p93 = scmp.ne.s32.totalorder %s79, %s80
      %p94 = scmp.eq.s32.totalorder %s22, 3
      %p95 = por %p93, %p94
      %p97 = scmp.ne.s32.totalorder %s80, %s96
      %p98 = scmp.eq.s32.totalorder %s22, 0
      %p99 = por %p97, %p98
      %s100 = sadd.s32 %s24, 1
      %s101 = smul.u32 %s100, 4
      %p102 = scmp.lt.s32.totalorder %s101, 7
      %s103 = scalar_select %p102, %s101, 7
      %s104 = sadd.s32 %s31, 1
      %s105 = smul.u32 %s104, 4
      %p106 = scmp.lt.s32.totalorder %s105, 7
      %s107 = scalar_select %p106, %s105, 7
      %s108 = ssub.s32 %s23, %s35
      %s109 = ssub.s32 %s103, %s107
      %s110 = sor.u32 %s108, %s109
      %p111 = scmp.eq.s32.totalorder %s110, 0
      %s113 = sadd.s32 %s112, 1
      %s114 = scalar_select %p111, %s112, %s113
      %p117 = pneg %p111
      %p118 = scmp.eq.s32.totalorder %s16, 3
      %p119 = por %p117, %p118
      %p120 = scmp.ne.s32.totalorder %s112, %s115
      %p121 = scmp.eq.s32.totalorder %s16, 0
      %p122 = por %p120, %p121
      %p123 = scmp.ne.s32.totalorder %s112, %s115
      %p124 = scmp.eq.s32.totalorder %s21, 3
      %p125 = por %p123, %p124
      %p126 = scmp.ne.s32.totalorder %s115, %s116
      %p127 = scmp.eq.s32.totalorder %s21, 0
      %p128 = por %p126, %p127
      %p129 = scmp.ne.s32.totalorder %s115, %s116
      %p130 = scmp.eq.s32.totalorder %s22, 3
      %p131 = por %p129, %p130
      %p133 = scmp.ne.s32.totalorder %s116, %s132
      %p134 = scmp.eq.s32.totalorder %s22, 0
      %p135 = por %p133, %p134
      %s137 = sadd.s32 %s136, 1
      %p140 = scmp.eq.s32.totalorder %s16, 3
      %p141 = scmp.ne.s32.totalorder %s136, %s138
      %p142 = scmp.eq.s32.totalorder %s16, 0
      %p143 = por %p141, %p142
      %p144 = scmp.ne.s32.totalorder %s136, %s138
      %p145 = scmp.eq.s32.totalorder %s21, 3
      %p146 = por %p144, %p145
      %p147 = scmp.ne.s32.totalorder %s138, %s139
      %p148 = scmp.eq.s32.totalorder %s21, 0
      %p149 = por %p147, %p148
      %p150 = scmp.ne.s32.totalorder %s138, %s139
      %p151 = scmp.eq.s32.totalorder %s22, 3
      %p152 = por %p150, %p151
      %p154 = scmp.ne.s32.totalorder %s139, %s153
      %p155 = scmp.eq.s32.totalorder %s22, 0
      %p156 = por %p154, %p155
      %s158 = sadd.s32 %s157, 1
      %p161 = scmp.eq.s32.totalorder %s16, 3
      %p162 = scmp.ne.s32.totalorder %s157, %s159
      %p163 = scmp.eq.s32.totalorder %s16, 0
      %p164 = por %p162, %p163
      %p165 = scmp.ne.s32.totalorder %s157, %s159
      %p166 = scmp.eq.s32.totalorder %s21, 3
      %p167 = por %p165, %p166
      %p168 = scmp.ne.s32.totalorder %s159, %s160
      %p169 = scmp.eq.s32.totalorder %s21, 0
      %p170 = por %p168, %p169
      %p171 = scmp.ne.s32.totalorder %s159, %s160
      %p172 = scmp.eq.s32.totalorder %s22, 3
      %p173 = por %p171, %p172
      %p175 = scmp.ne.s32.totalorder %s160, %s174
      %p176 = scmp.eq.s32.totalorder %s22, 0
      %p177 = por %p175, %p176
      %s179 = sadd.s32 %s178, 1
      %p182 = scmp.eq.s32.totalorder %s16, 3
      %p183 = scmp.ne.s32.totalorder %s178, %s180
      %p184 = scmp.eq.s32.totalorder %s16, 0
      %p185 = por %p183, %p184
      %p186 = scmp.ne.s32.totalorder %s178, %s180
      %p187 = scmp.eq.s32.totalorder %s21, 3
      %p188 = por %p186, %p187
      %p189 = scmp.ne.s32.totalorder %s180, %s181
      %p190 = scmp.eq.s32.totalorder %s21, 0
      %p191 = por %p189, %p190
      %p192 = scmp.ne.s32.totalorder %s180, %s181
      %p193 = scmp.eq.s32.totalorder %s22, 3
      %p194 = por %p192, %p193
      %p196 = scmp.ne.s32.totalorder %s181, %s195
      %p197 = scmp.eq.s32.totalorder %s22, 0
      %p198 = por %p196, %p197
      %s200 = sadd.s32 %s199, 1
      %p203 = scmp.eq.s32.totalorder %s16, 3
      %p204 = scmp.ne.s32.totalorder %s199, %s201
      %p205 = scmp.eq.s32.totalorder %s16, 0
      %p206 = por %p204, %p205
      %p207 = scmp.ne.s32.totalorder %s199, %s201
      %p208 = scmp.eq.s32.totalorder %s21, 3
      %p209 = por %p207, %p208
      %p210 = scmp.ne.s32.totalorder %s201, %s202
      %p211 = scmp.eq.s32.totalorder %s21, 0
      %p212 = por %p210, %p211
      %p213 = scmp.ne.s32.totalorder %s201, %s202
      %p214 = scmp.eq.s32.totalorder %s22, 3
      %p215 = por %p213, %p214
      %p217 = scmp.ne.s32.totalorder %s202, %s216
      %p218 = scmp.eq.s32.totalorder %s22, 0
      %p219 = por %p217, %p218
      %s220 = ssub.s32 %s23, %s35
      %s221 = ssub.s32 %s24, %s31
      %s222 = sor.u32 %s220, %s221
      %p223 = scmp.eq.s32.totalorder %s222, 0
      %s225 = sadd.s32 %s224, 1
      %s226 = scalar_select %p223, %s224, %s225
      %p229 = pneg %p223
      %p230 = scmp.eq.s32.totalorder %s16, 3
      %p231 = por %p229, %p230
      %p232 = scmp.ne.s32.totalorder %s224, %s227
      %p233 = scmp.eq.s32.totalorder %s16, 0
      %p234 = por %p232, %p233
      %p235 = scmp.ne.s32.totalorder %s224, %s227
      %p236 = scmp.eq.s32.totalorder %s21, 3
      %p237 = por %p235, %p236
      %p238 = scmp.ne.s32.totalorder %s227, %s228
      %p239 = scmp.eq.s32.totalorder %s21, 0
      %p240 = por %p238, %p239
      %p241 = scmp.ne.s32.totalorder %s227, %s228
      %p242 = scmp.eq.s32.totalorder %s22, 3
      %p243 = por %p241, %p242
      %p245 = scmp.ne.s32.totalorder %s228, %s244
      %p246 = scmp.eq.s32.totalorder %s22, 0
      %p247 = por %p245, %p246
      %p248 = scmp.le.s32.totalorder 1, %s16
      %p249 = scmp.lt.s32.totalorder %s16, 5
      %p250 = pnand %p248, %p249
      %p251 = pneg %p250
      // Predicated region
      $region9: #{tpu_custom_call.1} parent=5 // pred_check
        _
      $region10: #{tpu_custom_call.1} parent=5 // pred_check_branch
        %253 = sbr.rel (%p250) target = $region12
      $region11: #{tpu_custom_call.1} parent=5 // pred_region
        %s254 = ssub.s32 %s16, 1
        // Predicated region
        $region13: #{tpu_custom_call.1} parent=11 // pred_check
          %p255 = pneg %p149
        $region14: #{tpu_custom_call.1} parent=11 // pred_check_branch
          %257 = sbr.rel (%p255) target = $region16
        $region15: #{tpu_custom_call.1} parent=11 // pred_region
          _
        $region16: #{tpu_custom_call.1} parent=11 // pred_fallthru
          _
        // Predicated region
        $region17: #{tpu_custom_call.1} parent=11 // pred_check
          %p258 = pneg %p170
        $region18: #{tpu_custom_call.1} parent=11 // pred_check_branch
          %260 = sbr.rel (%p258) target = $region20
        $region19: #{tpu_custom_call.1} parent=11 // pred_region
          _
        $region20: #{tpu_custom_call.1} parent=11 // pred_fallthru
          _
        // Predicated region
        $region21: #{tpu_custom_call.1} parent=11 // pred_check
          %p261 = pneg %p191
        $region22: #{tpu_custom_call.1} parent=11 // pred_check_branch
          %263 = sbr.rel (%p261) target = $region24
        $region23: #{tpu_custom_call.1} parent=11 // pred_region
          _
        $region24: #{tpu_custom_call.1} parent=11 // pred_fallthru
          _
        // Predicated region
        $region25: #{tpu_custom_call.1} parent=11 // pred_check
          %p264 = pneg %p212
        $region26: #{tpu_custom_call.1} parent=11 // pred_check_branch
          %266 = sbr.rel (%p264) target = $region28
        $region27: #{tpu_custom_call.1} parent=11 // pred_region
          _
        $region28: #{tpu_custom_call.1} parent=11 // pred_fallthru
          _
      $region12: #{tpu_custom_call.1} parent=5 // pred_fallthru
        _
      %p267 = scmp.lt.s32.totalorder %s16, 4
      // Predicated region
      $region29: #{tpu_custom_call.1} parent=5 // pred_check
        %p268 = pneg %p267
      $region30: #{tpu_custom_call.1} parent=5 // pred_check_branch
        %270 = sbr.rel (%p268) target = $region32
      $region31: #{tpu_custom_call.1} parent=5 // pred_region
        // Predicated region
        $region33: #{tpu_custom_call.1} parent=31 // pred_check
          %p271 = pneg %p50
        $region34: #{tpu_custom_call.1} parent=31 // pred_check_branch
          %273 = sbr.rel (%p271) target = $region36
        $region35: #{tpu_custom_call.1} parent=31 // pred_region
          %s274 = smul.u32 8, %s24
          %p275 = scmp.lt.s32.totalorder %s23, 1
          %s276 = scalar_select %p275, %s23, 1
          %p277 = scmp.lt.s32.totalorder %s274, 15
          %s278 = scalar_select %p277, %s274, 15
          %s279 = smul.addr %s278, 2
          %s280 = smul.addr %s276, 32
          %s281 = sadd.s32 %s279, %s280
          %s282 = smul.addr %s281, 8
          %s283 = scalar_lea.vmem %s0, %s282
          %s284 = smul.u32 8, %s24
        $region36: #{tpu_custom_call.1} parent=31 // pred_fallthru
          _
        // Predicated region
        $region37: #{tpu_custom_call.1} parent=31 // pred_check
          %p285 = pneg %p86
        $region38: #{tpu_custom_call.1} parent=31 // pred_check_branch
          %287 = sbr.rel (%p285) target = $region40
        $region39: #{tpu_custom_call.1} parent=31 // pred_region
          %s288 = smul.u32 %s24, 4
          %s289 = ssub.s32 %s288, 1
          %p290 = scmp.gt.s32.totalorder %s289, 0
          %s291 = scalar_select %p290, %s289, 0
          %s292 = smul.u32 2, %s291
          %p293 = scmp.lt.s32.totalorder %s23, 1
          %s294 = scalar_select %p293, %s23, 1
          %p295 = scmp.lt.s32.totalorder %s292, 15
          %s296 = scalar_select %p295, %s292, 15
          %s297 = smul.addr %s296, 2
          %s298 = smul.addr %s294, 32
          %s299 = sadd.s32 %s297, %s298
          %s300 = smul.addr %s299, 8
          %s301 = scalar_lea.vmem %s1, %s300
          %s302 = smul.u32 %s24, 4
          %s303 = ssub.s32 %s302, 1
          %p304 = scmp.gt.s32.totalorder %s303, 0
          %s305 = scalar_select %p304, %s303, 0
          %s306 = smul.u32 2, %s305
        $region40: #{tpu_custom_call.1} parent=31 // pred_fallthru
          _
        // Predicated region
        $region41: #{tpu_custom_call.1} parent=31 // pred_check
          %p307 = pneg %p122
        $region42: #{tpu_custom_call.1} parent=31 // pred_check_branch
          %309 = sbr.rel (%p307) target = $region44
        $region43: #{tpu_custom_call.1} parent=31 // pred_region
          %s310 = sadd.s32 %s24, 1
          %s311 = smul.u32 %s310, 4
          %p312 = scmp.lt.s32.totalorder %s311, 7
          %s313 = scalar_select %p312, %s311, 7
          %s314 = smul.u32 2, %s313
          %p315 = scmp.lt.s32.totalorder %s23, 1
          %s316 = scalar_select %p315, %s23, 1
          %p317 = scmp.lt.s32.totalorder %s314, 15
          %s318 = scalar_select %p317, %s314, 15
          %s319 = smul.addr %s318, 2
          %s320 = smul.addr %s316, 32
          %s321 = sadd.s32 %s319, %s320
          %s322 = smul.addr %s321, 8
          %s323 = scalar_lea.vmem %s2, %s322
          %s324 = sadd.s32 %s24, 1
          %s325 = smul.u32 %s324, 4
          %p326 = scmp.lt.s32.totalorder %s325, 7
          %s327 = scalar_select %p326, %s325, 7
          %s328 = smul.u32 2, %s327
        $region44: #{tpu_custom_call.1} parent=31 // pred_fallthru
          _
      $region32: #{tpu_custom_call.1} parent=5 // pred_fallthru
        _
      %p329 = scmp.le.s32.totalorder 1, %s16
      %p330 = scmp.lt.s32.totalorder %s16, 5
      %p331 = pnand %p329, %p330
      %p332 = pneg %p331
      // Predicated region
      $region45: #{tpu_custom_call.1} parent=5 // pred_check
        _
      $region46: #{tpu_custom_call.1} parent=5 // pred_check_branch
        %334 = sbr.rel (%p331) target = $region48
      $region47: #{tpu_custom_call.1} parent=5 // pred_region
        %s335 = ssub.s32 %s16, 1
        %s336 = smul.u32 8, %s26
        %p337 = scmp.lt.s32.totalorder %s25, 1
        %s338 = scalar_select %p337, %s25, 1
        %p339 = scmp.lt.s32.totalorder %s336, 15
        %s340 = scalar_select %p339, %s336, 15
        %s341 = smul.addr %s340, 2
        %s342 = smul.addr %s338, 32
        %s343 = sadd.s32 %s341, %s342
        %s344 = smul.addr %s343, 8
        %s345 = scalar_lea.vmem %s0, %s344
        %p346 = pneg %p56
        %p347 = pneg %p53
        %s348 = smul.u32 %s26, 4
        %s349 = ssub.s32 %s348, 1
        %p350 = scmp.gt.s32.totalorder %s349, 0
        %s351 = scalar_select %p350, %s349, 0
        %s352 = smul.u32 2, %s351
        %p353 = scmp.lt.s32.totalorder %s25, 1
        %s354 = scalar_select %p353, %s25, 1
        %p355 = scmp.lt.s32.totalorder %s352, 15
        %s356 = scalar_select %p355, %s352, 15
        %s357 = smul.addr %s356, 2
        %s358 = smul.addr %s354, 32
        %s359 = sadd.s32 %s357, %s358
        %s360 = smul.addr %s359, 8
        %s361 = scalar_lea.vmem %s1, %s360
        %p362 = pneg %p92
        %p363 = pneg %p89
        %s364 = sadd.s32 %s26, 1
        %s365 = smul.u32 %s364, 4
        %p366 = scmp.lt.s32.totalorder %s365, 7
        %s367 = scalar_select %p366, %s365, 7
        %s368 = smul.u32 2, %s367
        %p369 = scmp.lt.s32.totalorder %s25, 1
        %s370 = scalar_select %p369, %s25, 1
        %p371 = scmp.lt.s32.totalorder %s368, 15
        %s372 = scalar_select %p371, %s368, 15
        %s373 = smul.addr %s372, 2
        %s374 = smul.addr %s370, 32
        %s375 = sadd.s32 %s373, %s374
        %s376 = smul.addr %s375, 8
        %s377 = scalar_lea.vmem %s2, %s376
        %p378 = pneg %p128
        %p379 = pneg %p125
        %p380 = pneg %p149
        %p381 = pneg %p146
        %p382 = pneg %p170
        %p383 = pneg %p167
        %p384 = pneg %p191
        %p385 = pneg %p188
        %p386 = pneg %p212
        %p387 = pneg %p209
        %p388 = pneg %p240
        %p389 = pneg %p237
        %s390 = sand.u32 %s227, 1
        %s391 = scalar_lea.sflag [#allocation3], %s390
        %s392 = sand.u32 %s227, 1
        %s393 = smul.addr %s392, 128
        %s394 = scalar_lea.vmem [#allocation2], %s393
        %s395 = smul.u32 8, %s26
        %p396 = scmp.lt.s32.totalorder %s25, 1
        %s397 = scalar_select %p396, %s25, 1
        %p398 = scmp.lt.s32.totalorder %s395, 15
        %s399 = scalar_select %p398, %s395, 15
        %s400 = smul.addr %s399, 2
        %s401 = smul.addr %s397, 32
        %s402 = sadd.s32 %s400, %s401
        %s403 = smul.addr %s402, 8
        %s404 = scalar_lea.vmem %s0, %s403
        %s405 = smul.u32 8, %s26
        %s406 = smul.u32 %s26, 4
        %s407 = ssub.s32 %s406, 1
        %p408 = scmp.gt.s32.totalorder %s407, 0
        %s409 = scalar_select %p408, %s407, 0
        %s410 = smul.u32 2, %s409
        %p411 = scmp.lt.s32.totalorder %s25, 1
        %s412 = scalar_select %p411, %s25, 1
        %p413 = scmp.lt.s32.totalorder %s410, 15
        %s414 = scalar_select %p413, %s410, 15
        %s415 = smul.addr %s414, 2
        %s416 = smul.addr %s412, 32
        %s417 = sadd.s32 %s415, %s416
        %s418 = smul.addr %s417, 8
        %s419 = scalar_lea.vmem %s1, %s418
        %s420 = smul.u32 %s26, 4
        %s421 = ssub.s32 %s420, 1
        %p422 = scmp.gt.s32.totalorder %s421, 0
        %s423 = scalar_select %p422, %s421, 0
        %s424 = smul.u32 2, %s423
        %s425 = sadd.s32 %s26, 1
        %s426 = smul.u32 %s425, 4
        %p427 = scmp.lt.s32.totalorder %s426, 7
        %s428 = scalar_select %p427, %s426, 7
        %s429 = smul.u32 2, %s428
        %p430 = scmp.lt.s32.totalorder %s25, 1
        %s431 = scalar_select %p430, %s25, 1
        %p432 = scmp.lt.s32.totalorder %s429, 15
        %s433 = scalar_select %p432, %s429, 15
        %s434 = smul.addr %s433, 2
        %s435 = smul.addr %s431, 32
        %s436 = sadd.s32 %s434, %s435
        %s437 = smul.addr %s436, 8
        %s438 = scalar_lea.vmem %s2, %s437
        %s439 = sadd.s32 %s26, 1
        %s440 = smul.u32 %s439, 4
        %p441 = scmp.lt.s32.totalorder %s440, 7
        %s442 = scalar_select %p441, %s440, 7
        %s443 = smul.u32 2, %s442
        %s444 = smul.u32 8, %s26
        %v445 = vld [vmem:[%s404] sm:$0xff]
        %v446 = vld [vmem:[%s404 + $0x8] sm:$0xff]
        %v447 = vld [vmem:[%s404 + $0x10] sm:$0xff]
        %v448 = vld [vmem:[%s404 + $0x18] sm:$0xff]
        %v449 = vld [vmem:[%s404 + $0x20] sm:$0xff]
        %v450 = vld [vmem:[%s404 + $0x28] sm:$0xff]
        %v451 = vld [vmem:[%s404 + $0x30] sm:$0xff]
        %v452 = vld [vmem:[%s404 + $0x38] sm:$0xff]
        %v453 = vld [vmem:[%s404 + $0x40] sm:$0xff]
        %v454 = vld [vmem:[%s404 + $0x48] sm:$0xff]
        %v455 = vld [vmem:[%s404 + $0x50] sm:$0xff]
        %v456 = vld [vmem:[%s404 + $0x58] sm:$0xff]
        %v457 = vld [vmem:[%s404 + $0x60] sm:$0xff]
        %v458 = vld [vmem:[%s404 + $0x68] sm:$0xff]
        %v459 = vld [vmem:[%s404 + $0x70] sm:$0xff]
        %v460 = vld [vmem:[%s404 + $0x78] sm:$0xff]
        %v461 = vld [vmem:[%s419] sm:$0xff]
        %v462 = vld [vmem:[%s419 + $0x8] sm:$0xff]
        %v463 = vld [vmem:[%s419 + $0x10] sm:$0xff]
        %v464 = vld [vmem:[%s419 + $0x18] sm:$0xff]
        %p465 = scmp.gt.s32.totalorder %s26, 0
        %s466 = scalar_select %p465, 1, 0
        %s467 = scvt.s32.f32 %s466
        %v468 = vstv %s467
        %v469 = vmul.f32 %v461, %v468
        %v470 = vmul.f32 %v462, %v468
        %v471 = vmul.f32 %v463, %v468
        %v472 = vmul.f32 %v464, %v468
        %v473 = vld [vmem:[%s438] sm:$0xff]
        %v474 = vld [vmem:[%s438 + $0x8] sm:$0xff]
        %v475 = vld [vmem:[%s438 + $0x10] sm:$0xff]
        %v476 = vld [vmem:[%s438 + $0x18] sm:$0xff]
        %p477 = scmp.lt.s32.totalorder %s26, 1
        %s478 = scalar_select %p477, 1, 0
        %s479 = scvt.s32.f32 %s478
        %v480 = vstv %s479
        %v481 = vmul.f32 %v473, %v480
        %v482 = vmul.f32 %v474, %v480
        %v483 = vmul.f32 %v475, %v480
        %v484 = vmul.f32 %v476, %v480
        %vm509 = vcmask 1040384
        %v510 = vrot.slane %v469, 7
        %v511 = vrot.slane %v470, 7
        %v512 = vsel %vm509, %v510, %v511
        %v513 = vrot.slane %v471, 7
        %v514 = vrot.slane %v472, 7
        %v515 = vsel %vm509, %v513, %v514
        %v516 = vrot.slane %v445, 7
        %v517 = vrot.slane %v446, 7
        %v518 = vsel %vm509, %v516, %v517
        %v519 = vrot.slane %v447, 7
        %v520 = vrot.slane %v448, 7
        %v521 = vsel %vm509, %v519, %v520
        %v522 = vrot.slane %v449, 7
        %v523 = vrot.slane %v450, 7
        %v524 = vsel %vm509, %v522, %v523
        %v525 = vrot.slane %v451, 7
        %v526 = vrot.slane %v452, 7
        %v527 = vsel %vm509, %v525, %v526
        %v528 = vrot.slane %v453, 7
        %v529 = vrot.slane %v454, 7
        %v530 = vsel %vm509, %v528, %v529
        %v531 = vrot.slane %v455, 7
        %v532 = vrot.slane %v456, 7
        %v533 = vsel %vm509, %v531, %v532
        %v534 = vrot.slane %v457, 7
        %v535 = vrot.slane %v458, 7
        %v536 = vsel %vm509, %v534, %v535
        %v537 = vrot.slane %v459, 7
        %v538 = vrot.slane %v460, 7
        %v539 = vsel %vm509, %v537, %v538
        %v540 = vrot.slane %v481, 7
        %v541 = vrot.slane %v482, 7
        %v542 = vsel %vm509, %v540, %v541
        %v543 = vrot.slane %v483, 7
        %v544 = vrot.slane %v484, 7
        %v545 = vsel %vm509, %v543, %v544
        %v570 = vsel %vm509, 0.0, %v510
        %v571 = vsel %vm509, 0.0, %v513
        %v572 = vsel %vm509, 0.0, %v516
        %v573 = vsel %vm509, 0.0, %v519
        %v574 = vsel %vm509, 0.0, %v522
        %v575 = vsel %vm509, 0.0, %v525
        %v576 = vsel %vm509, 0.0, %v528
        %v577 = vsel %vm509, 0.0, %v531
        %v578 = vsel %vm509, 0.0, %v534
        %v579 = vsel %vm509, 0.0, %v537
        %v580 = vsel %vm509, 0.0, %v540
        %v581 = vsel %vm509, 0.0, %v543
        %vm582 = vcmask 1046528
        %v583 = vrot.slane %v469, 1
        %v584 = vrot.slane %v470, 1
        %v585 = vsel %vm582, %v583, %v584
        %v586 = vrot.slane %v471, 1
        %v587 = vrot.slane %v472, 1
        %v588 = vsel %vm582, %v586, %v587
        %v589 = vrot.slane %v445, 1
        %v590 = vrot.slane %v446, 1
        %v591 = vsel %vm582, %v589, %v590
        %v592 = vrot.slane %v447, 1
        %v593 = vrot.slane %v448, 1
        %v594 = vsel %vm582, %v592, %v593
        %v595 = vrot.slane %v449, 1
        %v596 = vrot.slane %v450, 1
        %v597 = vsel %vm582, %v595, %v596
        %v598 = vrot.slane %v451, 1
        %v599 = vrot.slane %v452, 1
        %v600 = vsel %vm582, %v598, %v599
        %v601 = vrot.slane %v453, 1
        %v602 = vrot.slane %v454, 1
        %v603 = vsel %vm582, %v601, %v602
        %v604 = vrot.slane %v455, 1
        %v605 = vrot.slane %v456, 1
        %v606 = vsel %vm582, %v604, %v605
        %v607 = vrot.slane %v457, 1
        %v608 = vrot.slane %v458, 1
        %v609 = vsel %vm582, %v607, %v608
        %v610 = vrot.slane %v459, 1
        %v611 = vrot.slane %v460, 1
        %v612 = vsel %vm582, %v610, %v611
        %v613 = vrot.slane %v481, 1
        %v614 = vrot.slane %v482, 1
        %v615 = vsel %vm582, %v613, %v614
        %v616 = vrot.slane %v483, 1
        %v617 = vrot.slane %v484, 1
        %v618 = vsel %vm582, %v616, %v617
        %v631 = vsel %vm582, %v584, 0.0
        %v632 = vsel %vm582, %v587, 0.0
        %v633 = vsel %vm582, %v590, 0.0
        %v634 = vsel %vm582, %v593, 0.0
        %v635 = vsel %vm582, %v596, 0.0
        %v636 = vsel %vm582, %v599, 0.0
        %v637 = vsel %vm582, %v602, 0.0
        %v638 = vsel %vm582, %v605, 0.0
        %v639 = vsel %vm582, %v608, 0.0
        %v640 = vsel %vm582, %v611, 0.0
        %v641 = vsel %vm582, %v614, 0.0
        %v642 = vsel %vm582, %v617, 0.0
        %643 = vrot.lane.b32.xlu0 %v469, 8
        %v644 = vpop.permute.xlu0 %643
        %645 = vrot.lane.b32.xlu0 %v470, 8
        %v646 = vpop.permute.xlu0 %645
        %647 = vrot.lane.b32.xlu0 %v471, 8
        %v648 = vpop.permute.xlu0 %647
        %649 = vrot.lane.b32.xlu0 %v472, 8
        %v650 = vpop.permute.xlu0 %649
        %651 = vrot.lane.b32.xlu0 %v445, 8
        %v652 = vpop.permute.xlu0 %651
        %653 = vrot.lane.b32.xlu0 %v446, 8
        %v654 = vpop.permute.xlu0 %653
        %655 = vrot.lane.b32.xlu0 %v447, 8
        %v656 = vpop.permute.xlu0 %655
        %657 = vrot.lane.b32.xlu0 %v448, 8
        %v658 = vpop.permute.xlu0 %657
        %659 = vrot.lane.b32.xlu0 %v449, 8
        %v660 = vpop.permute.xlu0 %659
        %661 = vrot.lane.b32.xlu0 %v450, 8
        %v662 = vpop.permute.xlu0 %661
        %663 = vrot.lane.b32.xlu0 %v451, 8
        %v664 = vpop.permute.xlu0 %663
        %665 = vrot.lane.b32.xlu0 %v452, 8
        %v666 = vpop.permute.xlu0 %665
        %667 = vrot.lane.b32.xlu0 %v453, 8
        %v668 = vpop.permute.xlu0 %667
        %669 = vrot.lane.b32.xlu0 %v454, 8
        %v670 = vpop.permute.xlu0 %669
        %671 = vrot.lane.b32.xlu0 %v455, 8
        %v672 = vpop.permute.xlu0 %671
        %673 = vrot.lane.b32.xlu0 %v456, 8
        %v674 = vpop.permute.xlu0 %673
        %675 = vrot.lane.b32.xlu0 %v457, 8
        %v676 = vpop.permute.xlu0 %675
        %677 = vrot.lane.b32.xlu0 %v458, 8
        %v678 = vpop.permute.xlu0 %677
        %679 = vrot.lane.b32.xlu0 %v459, 8
        %v680 = vpop.permute.xlu0 %679
        %681 = vrot.lane.b32.xlu0 %v460, 8
        %v682 = vpop.permute.xlu0 %681
        %683 = vrot.lane.b32.xlu0 %v481, 8
        %v684 = vpop.permute.xlu0 %683
        %685 = vrot.lane.b32.xlu0 %v482, 8
        %v686 = vpop.permute.xlu0 %685
        %687 = vrot.lane.b32.xlu0 %v483, 8
        %v688 = vpop.permute.xlu0 %687
        %689 = vrot.lane.b32.xlu0 %v484, 8
        %v690 = vpop.permute.xlu0 %689
        %727 = vrot.lane.b32.xlu0 %v585, 16
        %v728 = vpop.permute.xlu0 %727
        %729 = vrot.lane.b32.xlu0 %v631, 16
        %v730 = vpop.permute.xlu0 %729
        %731 = vrot.lane.b32.xlu0 %v588, 16
        %v732 = vpop.permute.xlu0 %731
        %733 = vrot.lane.b32.xlu0 %v632, 16
        %v734 = vpop.permute.xlu0 %733
        %735 = vrot.lane.b32.xlu0 %v591, 16
        %v736 = vpop.permute.xlu0 %735
        %737 = vrot.lane.b32.xlu0 %v633, 16
        %v738 = vpop.permute.xlu0 %737
        %739 = vrot.lane.b32.xlu0 %v594, 16
        %v740 = vpop.permute.xlu0 %739
        %741 = vrot.lane.b32.xlu0 %v634, 16
        %v742 = vpop.permute.xlu0 %741
        %743 = vrot.lane.b32.xlu0 %v597, 16
        %v744 = vpop.permute.xlu0 %743
        %745 = vrot.lane.b32.xlu0 %v635, 16
        %v746 = vpop.permute.xlu0 %745
        %747 = vrot.lane.b32.xlu0 %v600, 16
        %v748 = vpop.permute.xlu0 %747
        %749 = vrot.lane.b32.xlu0 %v636, 16
        %v750 = vpop.permute.xlu0 %749
        %751 = vrot.lane.b32.xlu0 %v603, 16
        %v752 = vpop.permute.xlu0 %751
        %753 = vrot.lane.b32.xlu0 %v637, 16
        %v754 = vpop.permute.xlu0 %753
        %755 = vrot.lane.b32.xlu0 %v606, 16
        %v756 = vpop.permute.xlu0 %755
        %757 = vrot.lane.b32.xlu0 %v638, 16
        %v758 = vpop.permute.xlu0 %757
        %759 = vrot.lane.b32.xlu0 %v609, 16
        %v760 = vpop.permute.xlu0 %759
        %761 = vrot.lane.b32.xlu0 %v639, 16
        %v762 = vpop.permute.xlu0 %761
        %763 = vrot.lane.b32.xlu0 %v612, 16
        %v764 = vpop.permute.xlu0 %763
        %765 = vrot.lane.b32.xlu0 %v640, 16
        %v766 = vpop.permute.xlu0 %765
        %767 = vrot.lane.b32.xlu0 %v615, 16
        %v768 = vpop.permute.xlu0 %767
        %769 = vrot.lane.b32.xlu0 %v641, 16
        %v770 = vpop.permute.xlu0 %769
        %771 = vrot.lane.b32.xlu0 %v618, 16
        %v772 = vpop.permute.xlu0 %771
        %773 = vrot.lane.b32.xlu0 %v642, 16
        %v774 = vpop.permute.xlu0 %773
        %vm799 = vcmask 64512
        %v800 = vsel %vm799, %v570, %v644
        %v801 = vsel %vm799, %v512, %v646
        %v802 = vsel %vm799, %v571, %v648
        %v803 = vsel %vm799, %v515, %v650
        %v804 = vsel %vm799, %v572, %v652
        %v805 = vsel %vm799, %v518, %v654
        %v806 = vsel %vm799, %v573, %v656
        %v807 = vsel %vm799, %v521, %v658
        %v808 = vsel %vm799, %v574, %v660
        %v809 = vsel %vm799, %v524, %v662
        %v810 = vsel %vm799, %v575, %v664
        %v811 = vsel %vm799, %v527, %v666
        %v812 = vsel %vm799, %v576, %v668
        %v813 = vsel %vm799, %v530, %v670
        %v814 = vsel %vm799, %v577, %v672
        %v815 = vsel %vm799, %v533, %v674
        %v816 = vsel %vm799, %v578, %v676
        %v817 = vsel %vm799, %v536, %v678
        %v818 = vsel %vm799, %v579, %v680
        %v819 = vsel %vm799, %v539, %v682
        %v820 = vsel %vm799, %v580, %v684
        %v821 = vsel %vm799, %v542, %v686
        %v822 = vsel %vm799, %v581, %v688
        %v823 = vsel %vm799, %v545, %v690
        %vm824 = vcmask 130048
        %v825 = vsel %vm824, %v800, %v728
        %v826 = vsel %vm824, %v801, %v730
        %v827 = vsel %vm824, %v802, %v732
        %v828 = vsel %vm824, %v803, %v734
        %v829 = vsel %vm824, %v804, %v736
        %v830 = vsel %vm824, %v805, %v738
        %v831 = vsel %vm824, %v806, %v740
        %v832 = vsel %vm824, %v807, %v742
        %v833 = vsel %vm824, %v808, %v744
        %v834 = vsel %vm824, %v809, %v746
        %v835 = vsel %vm824, %v810, %v748
        %v836 = vsel %vm824, %v811, %v750
        %v837 = vsel %vm824, %v812, %v752
        %v838 = vsel %vm824, %v813, %v754
        %v839 = vsel %vm824, %v814, %v756
        %v840 = vsel %vm824, %v815, %v758
        %v841 = vsel %vm824, %v816, %v760
        %v842 = vsel %vm824, %v817, %v762
        %v843 = vsel %vm824, %v818, %v764
        %v844 = vsel %vm824, %v819, %v766
        %v845 = vsel %vm824, %v820, %v768
        %v846 = vsel %vm824, %v821, %v770
        %v847 = vsel %vm824, %v822, %v772
        %v848 = vsel %vm824, %v823, %v774
        %v849 = vld [vmem:[%s3] sm:$0xff]
        %v850 = vld [vmem:[%s3 + $0x8] sm:$0xff]
        %v851 = vld [vmem:[%s3 + $0x10] sm:$0xff]
        %s852 = scalar_lea.vmem %s3, 24
        %v853 = vld [vmem:[%s852] sm:$0xff]
        %v854 = vld [vmem:[%s852 + $0x8] sm:$0xff]
        %v855 = vld [vmem:[%s852 + $0x10] sm:$0xff]
        %vm856 = vcmask 195584
        %v858 = vsel %vm856, %v827, 0
        %v861 = vsel %vm856, %v828, 0
        %v864 = vsel %vm856, %v829, 0
        %v867 = vsel %vm856, %v830, 0
        %v870 = vsel %vm856, %v831, 0
        %v873 = vsel %vm856, %v832, 0
        %v876 = vsel %vm856, %v833, 0
        %v879 = vsel %vm856, %v834, 0
        %v882 = vsel %vm856, %v835, 0
        %v885 = vsel %vm856, %v836, 0
        %v888 = vsel %vm856, %v837, 0
        %v891 = vsel %vm856, %v838, 0
        %v894 = vsel %vm856, %v839, 0
        %v897 = vsel %vm856, %v840, 0
        %v900 = vsel %vm856, %v841, 0
        %v903 = vsel %vm856, %v842, 0
        %v906 = vsel %vm856, %v843, 0
        %v909 = vsel %vm856, %v844, 0
        %v912 = vsel %vm856, %v845, 0
        %v915 = vsel %vm856, %v846, 0
        %917 = vmatprep.subr.mxu0 0.0
        %918 = vmatpush1.msra.mxu0 %v853
        %919 = vmatprep.subr.mxu0 0.0
        %920 = vmatpush1.msra.mxu0 %v854
        %921 = vmatprep.subr.mxu0 0.0
        %922 = vmatpush1.msra.mxu0 %v855
        %923 = vmatprep.subr.mxu0 0.0
        %924 = vmatpush1.msra.mxu0 0.0
        %925 = vmatprep.subr.mxu0 0.0
        %926 = vmatpush1.msra.mxu0 0.0
        %927 = vmatprep.subr.mxu0 0.0
        %928 = vmatpush1.msra.mxu0 0.0
        %929 = vmatprep.subr.mxu0 0.0
        %930 = vmatpush1.msra.mxu0 0.0
        %931 = vmatprep.subr.mxu0 0.0
        %932 = vmatpush1.msra.mxu0 0.0
        %933 = vmatprep.subr.mxu0 0.0
        %934 = vmatpush1.msra.mxu0 0.0
        %935 = vmatprep.subr.mxu0 0.0
        %936 = vmatpush1.msra.mxu0 0.0
        %937 = vmatprep.subr.mxu0 0.0
        %938 = vmatpush1.msra.mxu0 0.0
        %939 = vmatprep.subr.mxu0 0.0
        %940 = vmatpush1.msra.mxu0 0.0
        %941 = vmatprep.subr.mxu0 0.0
        %942 = vmatpush1.msra.mxu0 0.0
        %943 = vmatprep.subr.mxu0 0.0
        %944 = vmatpush1.msra.mxu0 0.0
        %945 = vmatprep.subr.mxu0 0.0
        %946 = vmatpush1.msra.mxu0 0.0
        %947 = vmatprep.subr.mxu0 0.0
        %948 = vmatpush1.msra.mxu0 0.0
        %949 = vmatprep.subr.mxu0 0.0
        %950 = vmatpush1.msra.mxu0 0.0
        %951 = vmatprep.subr.mxu0 0.0
        %952 = vmatpush1.msra.mxu0 0.0
        %953 = vmatprep.subr.mxu0 0.0
        %954 = vmatpush1.msra.mxu0 0.0
        %955 = vmatprep.subr.mxu0 0.0
        %956 = vmatpush1.msra.mxu0 0.0
        %957 = vmatprep.subr.mxu0 0.0
        %958 = vmatpush1.msra.mxu0 0.0
        %959 = vmatprep.subr.mxu0 0.0
        %960 = vmatpush1.msra.mxu0 0.0
        %961 = vmatprep.subr.mxu0 0.0
        %962 = vmatpush1.msra.mxu0 0.0
        %963 = vmatprep.subr.mxu0 0.0
        %964 = vmatpush1.msra.mxu0 0.0
        %965 = vmatprep.subr.mxu0 0.0
        %966 = vmatpush1.msra.mxu0 0.0
        %967 = vmatprep.subr.mxu0 0.0
        %968 = vmatpush1.msra.mxu0 0.0
        %969 = vmatprep.subr.mxu0 0.0
        %970 = vmatpush1.msra.mxu0 0.0
        %971 = vmatprep.subr.mxu0 0.0
        %972 = vmatpush1.msra.mxu0 0.0
        %973 = vmatprep.subr.mxu0 0.0
        %974 = vmatpush1.msra.mxu0 0.0
        %975 = vmatprep.subr.mxu0 0.0
        %976 = vmatpush1.msra.mxu0 0.0
        %977 = vmatprep.subr.mxu0 0.0
        %978 = vmatpush1.msra.mxu0 0.0
        %979 = vmatprep.subr.mxu0 0.0
        %980 = vmatpush1.msra.mxu0 0.0
        %981 = vmatprep.mubr.f32.mxu0 0.0
        %982 = vmatmul.mubr.f32.gmra.mrb[0].mxu0 %v858
        %v983 = vpop.f32.mrb[0].mxu0
        %v984 = vadd.f32 0.0, %v983
        %v985 = vpop.f32.mrb[0].mxu0
        %986 = vmatprep.mubr.f32.mxu0 0.0
        %987 = vmatmul.mubr.f32.gmra.mrb[0].mxu0 %v861
        %v988 = vpop.f32.mrb[0].mxu0
        %v989 = vadd.f32 0.0, %v988
        %v990 = vpop.f32.mrb[0].mxu0
        %991 = vmatprep.mubr.f32.mxu0 0.0
        %992 = vmatmul.mubr.f32.gmra.mrb[0].mxu0 %v864
        %v993 = vpop.f32.mrb[0].mxu0
        %v994 = vadd.f32 0.0, %v993
        %v995 = vpop.f32.mrb[0].mxu0
        %996 = vmatprep.mubr.f32.mxu0 0.0
        %997 = vmatmul.mubr.f32.gmra.mrb[0].mxu0 %v867
        %v998 = vpop.f32.mrb[0].mxu0
        %v999 = vadd.f32 0.0, %v998
        %v1000 = vpop.f32.mrb[0].mxu0
        %1001 = vmatprep.mubr.f32.mxu0 0.0
        %1002 = vmatmul.mubr.f32.gmra.mrb[0].mxu0 %v870
        %v1003 = vpop.f32.mrb[0].mxu0
        %v1004 = vadd.f32 0.0, %v1003
        %v1005 = vpop.f32.mrb[0].mxu0
        %1006 = vmatprep.mubr.f32.mxu0 0.0
        %1007 = vmatmul.mubr.f32.gmra.mrb[0].mxu0 %v873
        %v1008 = vpop.f32.mrb[0].mxu0
        %v1009 = vadd.f32 0.0, %v1008
        %v1010 = vpop.f32.mrb[0].mxu0
        %1011 = vmatprep.mubr.f32.mxu0 0.0
        %1012 = vmatmul.mubr.f32.gmra.mrb[0].mxu0 %v876
        %v1013 = vpop.f32.mrb[0].mxu0
        %v1014 = vadd.f32 0.0, %v1013
        %v1015 = vpop.f32.mrb[0].mxu0
        %1016 = vmatprep.mubr.f32.mxu0 0.0
        %1017 = vmatmul.mubr.f32.gmra.mrb[0].mxu0 %v879
        %v1018 = vpop.f32.mrb[0].mxu0
        %v1019 = vadd.f32 0.0, %v1018
        %v1020 = vpop.f32.mrb[0].mxu0
        %1021 = vmatprep.mubr.f32.mxu0 0.0
        %1022 = vmatmul.mubr.f32.gmra.mrb[0].mxu0 %v882
        %v1023 = vpop.f32.mrb[0].mxu0
        %v1024 = vadd.f32 0.0, %v1023
        %v1025 = vpop.f32.mrb[0].mxu0
        %1026 = vmatprep.mubr.f32.mxu0 0.0
        %1027 = vmatmul.mubr.f32.gmra.mrb[0].mxu0 %v885
        %v1028 = vpop.f32.mrb[0].mxu0
        %v1029 = vadd.f32 0.0, %v1028
        %v1030 = vpop.f32.mrb[0].mxu0
        %1031 = vmatprep.mubr.f32.mxu0 0.0
        %1032 = vmatmul.mubr.f32.gmra.mrb[0].mxu0 %v888
        %v1033 = vpop.f32.mrb[0].mxu0
        %v1034 = vadd.f32 0.0, %v1033
        %v1035 = vpop.f32.mrb[0].mxu0
        %1036 = vmatprep.mubr.f32.mxu0 0.0
        %1037 = vmatmul.mubr.f32.gmra.mrb[0].mxu0 %v891
        %v1038 = vpop.f32.mrb[0].mxu0
        %v1039 = vadd.f32 0.0, %v1038
        %v1040 = vpop.f32.mrb[0].mxu0
        %1041 = vmatprep.mubr.f32.mxu0 0.0
        %1042 = vmatmul.mubr.f32.gmra.mrb[0].mxu0 %v894
        %v1043 = vpop.f32.mrb[0].mxu0
        %v1044 = vadd.f32 0.0, %v1043
        %v1045 = vpop.f32.mrb[0].mxu0
        %1046 = vmatprep.mubr.f32.mxu0 0.0
        %1047 = vmatmul.mubr.f32.gmra.mrb[0].mxu0 %v897
        %v1048 = vpop.f32.mrb[0].mxu0
        %v1049 = vadd.f32 0.0, %v1048
        %v1050 = vpop.f32.mrb[0].mxu0
        %1051 = vmatprep.mubr.f32.mxu0 0.0
        %1052 = vmatmul.mubr.f32.gmra.mrb[0].mxu0 %v900
        %v1053 = vpop.f32.mrb[0].mxu0
        %v1054 = vadd.f32 0.0, %v1053
        %v1055 = vpop.f32.mrb[0].mxu0
        %1056 = vmatprep.mubr.f32.mxu0 0.0
        %1057 = vmatmul.mubr.f32.gmra.mrb[0].mxu0 %v903
        %v1058 = vpop.f32.mrb[0].mxu0
        %v1059 = vadd.f32 0.0, %v1058
        %v1060 = vpop.f32.mrb[0].mxu0
        %1061 = vmatprep.mubr.f32.mxu0 0.0
        %1062 = vmatmul.mubr.f32.gmra.mrb[0].mxu0 %v906
        %v1063 = vpop.f32.mrb[0].mxu0
        %v1064 = vadd.f32 0.0, %v1063
        %v1065 = vpop.f32.mrb[0].mxu0
        %1066 = vmatprep.mubr.f32.mxu0 0.0
        %1067 = vmatmul.mubr.f32.gmra.mrb[0].mxu0 %v909
        %v1068 = vpop.f32.mrb[0].mxu0
        %v1069 = vadd.f32 0.0, %v1068
        %v1070 = vpop.f32.mrb[0].mxu0
        %1071 = vmatprep.mubr.f32.mxu0 0.0
        %1072 = vmatmul.mubr.f32.gmra.mrb[0].mxu0 %v912
        %v1073 = vpop.f32.mrb[0].mxu0
        %v1074 = vadd.f32 0.0, %v1073
        %v1075 = vpop.f32.mrb[0].mxu0
        %1076 = vmatprep.mubr.f32.mxu0 0.0
        %1077 = vmatmul.mubr.f32.gmra.mrb[0].mxu0 %v915
        %v1078 = vpop.f32.mrb[0].mxu0
        %v1079 = vadd.f32 0.0, %v1078
        %v1080 = vpop.f32.mrb[0].mxu0
        %1081 = vdwg.mxu0
        %v1083 = vsel %vm856, %v825, 0
        %v1086 = vsel %vm856, %v826, 0
        %1088 = vmatprep.subr.mxu0 0.0
        %1089 = vmatpush1.msra.mxu0 %v849
        %1090 = vmatprep.subr.mxu0 0.0
        %1091 = vmatpush1.msra.mxu0 %v850
        %1092 = vmatprep.subr.mxu0 0.0
        %1093 = vmatpush1.msra.mxu0 %v851
        %1094 = vmatprep.subr.mxu0 0.0
        %1095 = vmatpush1.msra.mxu0 0.0
        %1096 = vmatprep.subr.mxu0 0.0
        %1097 = vmatpush1.msra.mxu0 0.0
        %1098 = vmatprep.subr.mxu0 0.0
        %1099 = vmatpush1.msra.mxu0 0.0
        %1100 = vmatprep.subr.mxu0 0.0
        %1101 = vmatpush1.msra.mxu0 0.0
        %1102 = vmatprep.subr.mxu0 0.0
        %1103 = vmatpush1.msra.mxu0 0.0
        %1104 = vmatprep.subr.mxu0 0.0
        %1105 = vmatpush1.msra.mxu0 0.0
        %1106 = vmatprep.subr.mxu0 0.0
        %1107 = vmatpush1.msra.mxu0 0.0
        %1108 = vmatprep.subr.mxu0 0.0
        %1109 = vmatpush1.msra.mxu0 0.0
        %1110 = vmatprep.subr.mxu0 0.0
        %1111 = vmatpush1.msra.mxu0 0.0
        %1112 = vmatprep.subr.mxu0 0.0
        %1113 = vmatpush1.msra.mxu0 0.0
        %1114 = vmatprep.subr.mxu0 0.0
        %1115 = vmatpush1.msra.mxu0 0.0
        %1116 = vmatprep.subr.mxu0 0.0
        %1117 = vmatpush1.msra.mxu0 0.0
        %1118 = vmatprep.subr.mxu0 0.0
        %1119 = vmatpush1.msra.mxu0 0.0
        %1120 = vmatprep.subr.mxu0 0.0
        %1121 = vmatpush1.msra.mxu0 0.0
        %1122 = vmatprep.subr.mxu0 0.0
        %1123 = vmatpush1.msra.mxu0 0.0
        %1124 = vmatprep.subr.mxu0 0.0
        %1125 = vmatpush1.msra.mxu0 0.0
        %1126 = vmatprep.subr.mxu0 0.0
        %1127 = vmatpush1.msra.mxu0 0.0
        %1128 = vmatprep.subr.mxu0 0.0
        %1129 = vmatpush1.msra.mxu0 0.0
        %1130 = vmatprep.subr.mxu0 0.0
        %1131 = vmatpush1.msra.mxu0 0.0
        %1132 = vmatprep.subr.mxu0 0.0
        %1133 = vmatpush1.msra.mxu0 0.0
        %1134 = vmatprep.subr.mxu0 0.0
        %1135 = vmatpush1.msra.mxu0 0.0
        %1136 = vmatprep.subr.mxu0 0.0
        %1137 = vmatpush1.msra.mxu0 0.0
        %1138 = vmatprep.subr.mxu0 0.0
        %1139 = vmatpush1.msra.mxu0 0.0
        %1140 = vmatprep.subr.mxu0 0.0
        %1141 = vmatpush1.msra.mxu0 0.0
        %1142 = vmatprep.subr.mxu0 0.0
        %1143 = vmatpush1.msra.mxu0 0.0
        %1144 = vmatprep.subr.mxu0 0.0
        %1145 = vmatpush1.msra.mxu0 0.0
        %1146 = vmatprep.subr.mxu0 0.0
        %1147 = vmatpush1.msra.mxu0 0.0
        %1148 = vmatprep.subr.mxu0 0.0
        %1149 = vmatpush1.msra.mxu0 0.0
        %1150 = vmatprep.subr.mxu0 0.0
        %1151 = vmatpush1.msra.mxu0 0.0
        %1152 = vmatprep.mubr.f32.mxu0 0.0
        %1153 = vmatmul.mubr.f32.gmra.mrb[0].mxu0 %v1083
        %v1154 = vpop.f32.mrb[0].mxu0
        %v1155 = vadd.f32 %v984, %v1154
        %v1156 = vpop.f32.mrb[0].mxu0
        %1157 = vmatprep.mubr.f32.mxu0 0.0
        %1158 = vmatmul.mubr.f32.gmra.mrb[0].mxu0 %v1086
        %v1159 = vpop.f32.mrb[0].mxu0
        %v1160 = vadd.f32 %v989, %v1159
        %v1161 = vpop.f32.mrb[0].mxu0
        %1162 = vmatprep.mubr.f32.mxu0 0.0
        %1163 = vmatmul.mubr.f32.gmra.mrb[0].mxu0 %v858
        %v1164 = vpop.f32.mrb[0].mxu0
        %v1165 = vadd.f32 %v994, %v1164
        %v1166 = vpop.f32.mrb[0].mxu0
        %1167 = vmatprep.mubr.f32.mxu0 0.0
        %1168 = vmatmul.mubr.f32.gmra.mrb[0].mxu0 %v861
        %v1169 = vpop.f32.mrb[0].mxu0
        %v1170 = vadd.f32 %v999, %v1169
        %v1171 = vpop.f32.mrb[0].mxu0
        %1172 = vmatprep.mubr.f32.mxu0 0.0
        %1173 = vmatmul.mubr.f32.gmra.mrb[0].mxu0 %v864
        %v1174 = vpop.f32.mrb[0].mxu0
        %v1175 = vadd.f32 %v1004, %v1174
        %v1176 = vpop.f32.mrb[0].mxu0
        %1177 = vmatprep.mubr.f32.mxu0 0.0
        %1178 = vmatmul.mubr.f32.gmra.mrb[0].mxu0 %v867
        %v1179 = vpop.f32.mrb[0].mxu0
        %v1180 = vadd.f32 %v1009, %v1179
        %v1181 = vpop.f32.mrb[0].mxu0
        %1182 = vmatprep.mubr.f32.mxu0 0.0
        %1183 = vmatmul.mubr.f32.gmra.mrb[0].mxu0 %v870
        %v1184 = vpop.f32.mrb[0].mxu0
        %v1185 = vadd.f32 %v1014, %v1184
        %v1186 = vpop.f32.mrb[0].mxu0
        %1187 = vmatprep.mubr.f32.mxu0 0.0
        %1188 = vmatmul.mubr.f32.gmra.mrb[0].mxu0 %v873
        %v1189 = vpop.f32.mrb[0].mxu0
        %v1190 = vadd.f32 %v1019, %v1189
        %v1191 = vpop.f32.mrb[0].mxu0
        %1192 = vmatprep.mubr.f32.mxu0 0.0
        %1193 = vmatmul.mubr.f32.gmra.mrb[0].mxu0 %v876
        %v1194 = vpop.f32.mrb[0].mxu0
        %v1195 = vadd.f32 %v1024, %v1194
        %v1196 = vpop.f32.mrb[0].mxu0
        %1197 = vmatprep.mubr.f32.mxu0 0.0
        %1198 = vmatmul.mubr.f32.gmra.mrb[0].mxu0 %v879
        %v1199 = vpop.f32.mrb[0].mxu0
        %v1200 = vadd.f32 %v1029, %v1199
        %v1201 = vpop.f32.mrb[0].mxu0
        %1202 = vmatprep.mubr.f32.mxu0 0.0
        %1203 = vmatmul.mubr.f32.gmra.mrb[0].mxu0 %v882
        %v1204 = vpop.f32.mrb[0].mxu0
        %v1205 = vadd.f32 %v1034, %v1204
        %v1206 = vpop.f32.mrb[0].mxu0
        %1207 = vmatprep.mubr.f32.mxu0 0.0
        %1208 = vmatmul.mubr.f32.gmra.mrb[0].mxu0 %v885
        %v1209 = vpop.f32.mrb[0].mxu0
        %v1210 = vadd.f32 %v1039, %v1209
        %v1211 = vpop.f32.mrb[0].mxu0
        %1212 = vmatprep.mubr.f32.mxu0 0.0
        %1213 = vmatmul.mubr.f32.gmra.mrb[0].mxu0 %v888
        %v1214 = vpop.f32.mrb[0].mxu0
        %v1215 = vadd.f32 %v1044, %v1214
        %v1216 = vpop.f32.mrb[0].mxu0
        %1217 = vmatprep.mubr.f32.mxu0 0.0
        %1218 = vmatmul.mubr.f32.gmra.mrb[0].mxu0 %v891
        %v1219 = vpop.f32.mrb[0].mxu0
        %v1220 = vadd.f32 %v1049, %v1219
        %v1221 = vpop.f32.mrb[0].mxu0
        %1222 = vmatprep.mubr.f32.mxu0 0.0
        %1223 = vmatmul.mubr.f32.gmra.mrb[0].mxu0 %v894
        %v1224 = vpop.f32.mrb[0].mxu0
        %v1225 = vadd.f32 %v1054, %v1224
        %v1226 = vpop.f32.mrb[0].mxu0
        %1227 = vmatprep.mubr.f32.mxu0 0.0
        %1228 = vmatmul.mubr.f32.gmra.mrb[0].mxu0 %v897
        %v1229 = vpop.f32.mrb[0].mxu0
        %v1230 = vadd.f32 %v1059, %v1229
        %v1231 = vpop.f32.mrb[0].mxu0
        %1232 = vmatprep.mubr.f32.mxu0 0.0
        %1233 = vmatmul.mubr.f32.gmra.mrb[0].mxu0 %v900
        %v1234 = vpop.f32.mrb[0].mxu0
        %v1235 = vadd.f32 %v1064, %v1234
        %v1236 = vpop.f32.mrb[0].mxu0
        %1237 = vmatprep.mubr.f32.mxu0 0.0
        %1238 = vmatmul.mubr.f32.gmra.mrb[0].mxu0 %v903
        %v1239 = vpop.f32.mrb[0].mxu0
        %v1240 = vadd.f32 %v1069, %v1239
        %v1241 = vpop.f32.mrb[0].mxu0
        %1242 = vmatprep.mubr.f32.mxu0 0.0
        %1243 = vmatmul.mubr.f32.gmra.mrb[0].mxu0 %v906
        %v1244 = vpop.f32.mrb[0].mxu0
        %v1245 = vadd.f32 %v1074, %v1244
        %v1246 = vpop.f32.mrb[0].mxu0
        %1247 = vmatprep.mubr.f32.mxu0 0.0
        %1248 = vmatmul.mubr.f32.gmra.mrb[0].mxu0 %v909
        %v1249 = vpop.f32.mrb[0].mxu0
        %v1250 = vadd.f32 %v1079, %v1249
        %v1251 = vpop.f32.mrb[0].mxu0
        %1252 = vdwg.mxu0
        %s1253 = scalar_lea.vmem %s3, 48
        %v1254 = vld [vmem:[%s1253] sm:$0xff]
        %v1255 = vld [vmem:[%s1253 + $0x8] sm:$0xff]
        %v1256 = vld [vmem:[%s1253 + $0x10] sm:$0xff]
        %v1258 = vsel %vm856, %v847, 0
        %v1261 = vsel %vm856, %v848, 0
        %1263 = vmatprep.subr.mxu0 0.0
        %1264 = vmatpush1.msra.mxu0 %v1254
        %1265 = vmatprep.subr.mxu0 0.0
        %1266 = vmatpush1.msra.mxu0 %v1255
        %1267 = vmatprep.subr.mxu0 0.0
        %1268 = vmatpush1.msra.mxu0 %v1256
        %1269 = vmatprep.subr.mxu0 0.0
        %1270 = vmatpush1.msra.mxu0 0.0
        %1271 = vmatprep.subr.mxu0 0.0
        %1272 = vmatpush1.msra.mxu0 0.0
        %1273 = vmatprep.subr.mxu0 0.0
        %1274 = vmatpush1.msra.mxu0 0.0
        %1275 = vmatprep.subr.mxu0 0.0
        %1276 = vmatpush1.msra.mxu0 0.0
        %1277 = vmatprep.subr.mxu0 0.0
        %1278 = vmatpush1.msra.mxu0 0.0
        %1279 = vmatprep.subr.mxu0 0.0
        %1280 = vmatpush1.msra.mxu0 0.0
        %1281 = vmatprep.subr.mxu0 0.0
        %1282 = vmatpush1.msra.mxu0 0.0
        %1283 = vmatprep.subr.mxu0 0.0
        %1284 = vmatpush1.msra.mxu0 0.0
        %1285 = vmatprep.subr.mxu0 0.0
        %1286 = vmatpush1.msra.mxu0 0.0
        %1287 = vmatprep.subr.mxu0 0.0
        %1288 = vmatpush1.msra.mxu0 0.0
        %1289 = vmatprep.subr.mxu0 0.0
        %1290 = vmatpush1.msra.mxu0 0.0
        %1291 = vmatprep.subr.mxu0 0.0
        %1292 = vmatpush1.msra.mxu0 0.0
        %1293 = vmatprep.subr.mxu0 0.0
        %1294 = vmatpush1.msra.mxu0 0.0
        %1295 = vmatprep.subr.mxu0 0.0
        %1296 = vmatpush1.msra.mxu0 0.0
        %1297 = vmatprep.subr.mxu0 0.0
        %1298 = vmatpush1.msra.mxu0 0.0
        %1299 = vmatprep.subr.mxu0 0.0
        %1300 = vmatpush1.msra.mxu0 0.0
        %1301 = vmatprep.subr.mxu0 0.0
        %1302 = vmatpush1.msra.mxu0 0.0
        %1303 = vmatprep.subr.mxu0 0.0
        %1304 = vmatpush1.msra.mxu0 0.0
        %1305 = vmatprep.subr.mxu0 0.0
        %1306 = vmatpush1.msra.mxu0 0.0
        %1307 = vmatprep.subr.mxu0 0.0
        %1308 = vmatpush1.msra.mxu0 0.0
        %1309 = vmatprep.subr.mxu0 0.0
        %1310 = vmatpush1.msra.mxu0 0.0
        %1311 = vmatprep.subr.mxu0 0.0
        %1312 = vmatpush1.msra.mxu0 0.0
        %1313 = vmatprep.subr.mxu0 0.0
        %1314 = vmatpush1.msra.mxu0 0.0
        %1315 = vmatprep.subr.mxu0 0.0
        %1316 = vmatpush1.msra.mxu0 0.0
        %1317 = vmatprep.subr.mxu0 0.0
        %1318 = vmatpush1.msra.mxu0 0.0
        %1319 = vmatprep.subr.mxu0 0.0
        %1320 = vmatpush1.msra.mxu0 0.0
        %1321 = vmatprep.subr.mxu0 0.0
        %1322 = vmatpush1.msra.mxu0 0.0
        %1323 = vmatprep.subr.mxu0 0.0
        %1324 = vmatpush1.msra.mxu0 0.0
        %1325 = vmatprep.subr.mxu0 0.0
        %1326 = vmatpush1.msra.mxu0 0.0
        %1327 = vmatprep.mubr.f32.mxu0 0.0
        %1328 = vmatmul.mubr.f32.gmra.mrb[0].mxu0 %v864
        %v1329 = vpop.f32.mrb[0].mxu0
        %v1330 = vadd.f32 0.0, %v1329
        %v1331 = vpop.f32.mrb[0].mxu0
        %1332 = vmatprep.mubr.f32.mxu0 0.0
        %1333 = vmatmul.mubr.f32.gmra.mrb[0].mxu0 %v867
        %v1334 = vpop.f32.mrb[0].mxu0
        %v1335 = vadd.f32 0.0, %v1334
        %v1336 = vpop.f32.mrb[0].mxu0
        %1337 = vmatprep.mubr.f32.mxu0 0.0
        %1338 = vmatmul.mubr.f32.gmra.mrb[0].mxu0 %v870
        %v1339 = vpop.f32.mrb[0].mxu0
        %v1340 = vadd.f32 0.0, %v1339
        %v1341 = vpop.f32.mrb[0].mxu0
        %1342 = vmatprep.mubr.f32.mxu0 0.0
        %1343 = vmatmul.mubr.f32.gmra.mrb[0].mxu0 %v873
        %v1344 = vpop.f32.mrb[0].mxu0
        %v1345 = vadd.f32 0.0, %v1344
        %v1346 = vpop.f32.mrb[0].mxu0
        %1347 = vmatprep.mubr.f32.mxu0 0.0
        %1348 = vmatmul.mubr.f32.gmra.mrb[0].mxu0 %v876
        %v1349 = vpop.f32.mrb[0].mxu0
        %v1350 = vadd.f32 0.0, %v1349
        %v1351 = vpop.f32.mrb[0].mxu0
        %1352 = vmatprep.mubr.f32.mxu0 0.0
        %1353 = vmatmul.mubr.f32.gmra.mrb[0].mxu0 %v879
        %v1354 = vpop.f32.mrb[0].mxu0
        %v1355 = vadd.f32 0.0, %v1354
        %v1356 = vpop.f32.mrb[0].mxu0
        %1357 = vmatprep.mubr.f32.mxu0 0.0
        %1358 = vmatmul.mubr.f32.gmra.mrb[0].mxu0 %v882
        %v1359 = vpop.f32.mrb[0].mxu0
        %v1360 = vadd.f32 0.0, %v1359
        %v1361 = vpop.f32.mrb[0].mxu0
        %1362 = vmatprep.mubr.f32.mxu0 0.0
        %1363 = vmatmul.mubr.f32.gmra.mrb[0].mxu0 %v885
        %v1364 = vpop.f32.mrb[0].mxu0
        %v1365 = vadd.f32 0.0, %v1364
        %v1366 = vpop.f32.mrb[0].mxu0
        %1367 = vmatprep.mubr.f32.mxu0 0.0
        %1368 = vmatmul.mubr.f32.gmra.mrb[0].mxu0 %v888
        %v1369 = vpop.f32.mrb[0].mxu0
        %v1370 = vadd.f32 0.0, %v1369
        %v1371 = vpop.f32.mrb[0].mxu0
        %1372 = vmatprep.mubr.f32.mxu0 0.0
        %1373 = vmatmul.mubr.f32.gmra.mrb[0].mxu0 %v891
        %v1374 = vpop.f32.mrb[0].mxu0
        %v1375 = vadd.f32 0.0, %v1374
        %v1376 = vpop.f32.mrb[0].mxu0
        %1377 = vmatprep.mubr.f32.mxu0 0.0
        %1378 = vmatmul.mubr.f32.gmra.mrb[0].mxu0 %v894
        %v1379 = vpop.f32.mrb[0].mxu0
        %v1380 = vadd.f32 0.0, %v1379
        %v1381 = vpop.f32.mrb[0].mxu0
        %1382 = vmatprep.mubr.f32.mxu0 0.0
        %1383 = vmatmul.mubr.f32.gmra.mrb[0].mxu0 %v897
        %v1384 = vpop.f32.mrb[0].mxu0
        %v1385 = vadd.f32 0.0, %v1384
        %v1386 = vpop.f32.mrb[0].mxu0
        %1387 = vmatprep.mubr.f32.mxu0 0.0
        %1388 = vmatmul.mubr.f32.gmra.mrb[0].mxu0 %v900
        %v1389 = vpop.f32.mrb[0].mxu0
        %v1390 = vadd.f32 0.0, %v1389
        %v1391 = vpop.f32.mrb[0].mxu0
        %1392 = vmatprep.mubr.f32.mxu0 0.0
        %1393 = vmatmul.mubr.f32.gmra.mrb[0].mxu0 %v903
        %v1394 = vpop.f32.mrb[0].mxu0
        %v1395 = vadd.f32 0.0, %v1394
        %v1396 = vpop.f32.mrb[0].mxu0
        %1397 = vmatprep.mubr.f32.mxu0 0.0
        %1398 = vmatmul.mubr.f32.gmra.mrb[0].mxu0 %v906
        %v1399 = vpop.f32.mrb[0].mxu0
        %v1400 = vadd.f32 0.0, %v1399
        %v1401 = vpop.f32.mrb[0].mxu0
        %1402 = vmatprep.mubr.f32.mxu0 0.0
        %1403 = vmatmul.mubr.f32.gmra.mrb[0].mxu0 %v909
        %v1404 = vpop.f32.mrb[0].mxu0
        %v1405 = vadd.f32 0.0, %v1404
        %v1406 = vpop.f32.mrb[0].mxu0
        %1407 = vmatprep.mubr.f32.mxu0 0.0
        %1408 = vmatmul.mubr.f32.gmra.mrb[0].mxu0 %v912
        %v1409 = vpop.f32.mrb[0].mxu0
        %v1410 = vadd.f32 0.0, %v1409
        %v1411 = vpop.f32.mrb[0].mxu0
        %1412 = vmatprep.mubr.f32.mxu0 0.0
        %1413 = vmatmul.mubr.f32.gmra.mrb[0].mxu0 %v915
        %v1414 = vpop.f32.mrb[0].mxu0
        %v1415 = vadd.f32 0.0, %v1414
        %v1416 = vpop.f32.mrb[0].mxu0
        %1417 = vmatprep.mubr.f32.mxu0 0.0
        %1418 = vmatmul.mubr.f32.gmra.mrb[0].mxu0 %v1258
        %v1419 = vpop.f32.mrb[0].mxu0
        %v1420 = vadd.f32 0.0, %v1419
        %v1421 = vpop.f32.mrb[0].mxu0
        %1422 = vmatprep.mubr.f32.mxu0 0.0
        %1423 = vmatmul.mubr.f32.gmra.mrb[0].mxu0 %v1261
        %v1424 = vpop.f32.mrb[0].mxu0
        %v1425 = vadd.f32 0.0, %v1424
        %v1426 = vpop.f32.mrb[0].mxu0
        %1427 = vdwg.mxu0
        %v1428 = vadd.f32 %v1155, %v1330
        %v1429 = vadd.f32 %v1160, %v1335
        %v1430 = vadd.f32 %v1165, %v1340
        %v1431 = vadd.f32 %v1170, %v1345
        %v1432 = vadd.f32 %v1175, %v1350
        %v1433 = vadd.f32 %v1180, %v1355
        %v1434 = vadd.f32 %v1185, %v1360
        %v1435 = vadd.f32 %v1190, %v1365
        %v1436 = vadd.f32 %v1195, %v1370
        %v1437 = vadd.f32 %v1200, %v1375
        %v1438 = vadd.f32 %v1205, %v1380
        %v1439 = vadd.f32 %v1210, %v1385
        %v1440 = vadd.f32 %v1215, %v1390
        %v1441 = vadd.f32 %v1220, %v1395
        %v1442 = vadd.f32 %v1225, %v1400
        %v1443 = vadd.f32 %v1230, %v1405
        %v1444 = vadd.f32 %v1235, %v1410
        %v1445 = vadd.f32 %v1240, %v1415
        %v1446 = vadd.f32 %v1245, %v1420
        %v1447 = vadd.f32 %v1250, %v1425
        %v1448 = vld [vmem:[%s5] sm:$0x1]
        %v1449 = vlaneseq
        %v1450 = vshrl.u32 %v1449, 7
        %v1451 = vsub.s32 0, %v1450
        %v1452 = vrot.slane %v1448, %v1451
        %v1453 = vmul.f32 %v1428, %v1452
        %v1454 = vmul.f32 %v1429, %v1452
        %v1455 = vmul.f32 %v1430, %v1452
        %v1456 = vmul.f32 %v1431, %v1452
        %v1457 = vmul.f32 %v1432, %v1452
        %v1458 = vmul.f32 %v1433, %v1452
        %v1459 = vmul.f32 %v1434, %v1452
        %v1460 = vmul.f32 %v1435, %v1452
        %v1461 = vmul.f32 %v1436, %v1452
        %v1462 = vmul.f32 %v1437, %v1452
        %v1463 = vmul.f32 %v1438, %v1452
        %v1464 = vmul.f32 %v1439, %v1452
        %v1465 = vmul.f32 %v1440, %v1452
        %v1466 = vmul.f32 %v1441, %v1452
        %v1467 = vmul.f32 %v1442, %v1452
        %v1468 = vmul.f32 %v1443, %v1452
        %v1469 = vmul.f32 %v1444, %v1452
        %v1470 = vmul.f32 %v1445, %v1452
        %v1471 = vmul.f32 %v1446, %v1452
        %v1472 = vmul.f32 %v1447, %v1452
        %v1473 = vld [vmem:[%s6] sm:$0x1]
        %v1474 = vlaneseq
        %v1475 = vshrl.u32 %v1474, 7
        %v1476 = vsub.s32 0, %v1475
        %v1477 = vrot.slane %v1473, %v1476
        %v1478 = vadd.f32 %v1453, %v1477
        %v1479 = vadd.f32 %v1454, %v1477
        %v1480 = vadd.f32 %v1455, %v1477
        %v1481 = vadd.f32 %v1456, %v1477
        %v1482 = vadd.f32 %v1457, %v1477
        %v1483 = vadd.f32 %v1458, %v1477
        %v1484 = vadd.f32 %v1459, %v1477
        %v1485 = vadd.f32 %v1460, %v1477
        %v1486 = vadd.f32 %v1461, %v1477
        %v1487 = vadd.f32 %v1462, %v1477
        %v1488 = vadd.f32 %v1463, %v1477
        %v1489 = vadd.f32 %v1464, %v1477
        %v1490 = vadd.f32 %v1465, %v1477
        %v1491 = vadd.f32 %v1466, %v1477
        %v1492 = vadd.f32 %v1467, %v1477
        %v1493 = vadd.f32 %v1468, %v1477
        %v1494 = vadd.f32 %v1469, %v1477
        %v1495 = vadd.f32 %v1470, %v1477
        %v1496 = vadd.f32 %v1471, %v1477
        %v1497 = vadd.f32 %v1472, %v1477
        %v1498 = vmax.f32 %v1478, 0.0
        %v1499 = vmax.f32 %v1479, 0.0
        %v1500 = vmax.f32 %v1480, 0.0
        %v1501 = vmax.f32 %v1481, 0.0
        %v1502 = vmax.f32 %v1482, 0.0
        %v1503 = vmax.f32 %v1483, 0.0
        %v1504 = vmax.f32 %v1484, 0.0
        %v1505 = vmax.f32 %v1485, 0.0
        %v1506 = vmax.f32 %v1486, 0.0
        %v1507 = vmax.f32 %v1487, 0.0
        %v1508 = vmax.f32 %v1488, 0.0
        %v1509 = vmax.f32 %v1489, 0.0
        %v1510 = vmax.f32 %v1490, 0.0
        %v1511 = vmax.f32 %v1491, 0.0
        %v1512 = vmax.f32 %v1492, 0.0
        %v1513 = vmax.f32 %v1493, 0.0
        %v1514 = vmax.f32 %v1494, 0.0
        %v1515 = vmax.f32 %v1495, 0.0
        %v1516 = vmax.f32 %v1496, 0.0
        %v1517 = vmax.f32 %v1497, 0.0
        %s1518 = smul.u32 %s26, 8
        %s1519 = ssub.s32 %s1518, 1
        %v1520 = vstv %s1519
        %v1521 = vadd.s32 %v1520, 1
        %v1522 = vadd.s32 %v1520, 2
        %v1523 = vadd.s32 %v1520, 3
        %v1524 = vadd.s32 %v1520, 4
        %v1525 = vadd.s32 %v1520, 5
        %v1526 = vadd.s32 %v1520, 6
        %v1527 = vadd.s32 %v1520, 7
        %v1528 = vadd.s32 %v1520, 8
        %v1529 = vadd.s32 %v1520, 9
        %vm1530 = vcmp.ge.s32.totalorder %v1520, 0
        %vm1531 = vcmp.ge.s32.totalorder %v1521, 0
        %vm1532 = vcmp.ge.s32.totalorder %v1522, 0
        %vm1533 = vcmp.ge.s32.totalorder %v1523, 0
        %vm1534 = vcmp.ge.s32.totalorder %v1524, 0
        %vm1535 = vcmp.ge.s32.totalorder %v1525, 0
        %vm1536 = vcmp.ge.s32.totalorder %v1526, 0
        %vm1537 = vcmp.ge.s32.totalorder %v1527, 0
        %vm1538 = vcmp.ge.s32.totalorder %v1528, 0
        %vm1539 = vcmp.ge.s32.totalorder %v1529, 0
        %vm1540 = vcmp.lt.s32.totalorder %v1520, 16
        %vm1541 = vcmp.lt.s32.totalorder %v1521, 16
        %vm1542 = vcmp.lt.s32.totalorder %v1522, 16
        %vm1543 = vcmp.lt.s32.totalorder %v1523, 16
        %vm1544 = vcmp.lt.s32.totalorder %v1524, 16
        %vm1545 = vcmp.lt.s32.totalorder %v1525, 16
        %vm1546 = vcmp.lt.s32.totalorder %v1526, 16
        %vm1547 = vcmp.lt.s32.totalorder %v1527, 16
        %vm1548 = vcmp.lt.s32.totalorder %v1528, 16
        %vm1549 = vcmp.lt.s32.totalorder %v1529, 16
        %vm1550 = vmand %vm1530, %vm1540
        %vm1551 = vmand %vm1531, %vm1541
        %vm1552 = vmand %vm1532, %vm1542
        %vm1553 = vmand %vm1533, %vm1543
        %vm1554 = vmand %vm1534, %vm1544
        %vm1555 = vmand %vm1535, %vm1545
        %vm1556 = vmand %vm1536, %vm1546
        %vm1557 = vmand %vm1537, %vm1547
        %vm1558 = vmand %vm1538, %vm1548
        %vm1559 = vmand %vm1539, %vm1549
        %v1560 = vsel %vm1550, 1, 0
        %v1561 = vsel %vm1551, 1, 0
        %v1562 = vsel %vm1552, 1, 0
        %v1563 = vsel %vm1553, 1, 0
        %v1564 = vsel %vm1554, 1, 0
        %v1565 = vsel %vm1555, 1, 0
        %v1566 = vsel %vm1556, 1, 0
        %v1567 = vsel %vm1557, 1, 0
        %v1568 = vsel %vm1558, 1, 0
        %v1569 = vsel %vm1559, 1, 0
        %vm1570 = vcmp.eq.s32.totalorder %v1560, 1
        %vm1571 = vcmp.eq.s32.totalorder %v1561, 1
        %vm1572 = vcmp.eq.s32.totalorder %v1562, 1
        %vm1573 = vcmp.eq.s32.totalorder %v1563, 1
        %vm1574 = vcmp.eq.s32.totalorder %v1564, 1
        %vm1575 = vcmp.eq.s32.totalorder %v1565, 1
        %vm1576 = vcmp.eq.s32.totalorder %v1566, 1
        %vm1577 = vcmp.eq.s32.totalorder %v1567, 1
        %vm1578 = vcmp.eq.s32.totalorder %v1568, 1
        %vm1579 = vcmp.eq.s32.totalorder %v1569, 1
        %v1580 = vsel %vm1570, %v1498, 0.0
        %v1581 = vsel %vm1570, %v1499, 0.0
        %v1582 = vsel %vm1571, %v1500, 0.0
        %v1583 = vsel %vm1571, %v1501, 0.0
        %v1584 = vsel %vm1572, %v1502, 0.0
        %v1585 = vsel %vm1572, %v1503, 0.0
        %v1586 = vsel %vm1573, %v1504, 0.0
        %v1587 = vsel %vm1573, %v1505, 0.0
        %v1588 = vsel %vm1574, %v1506, 0.0
        %v1589 = vsel %vm1574, %v1507, 0.0
        %v1590 = vsel %vm1575, %v1508, 0.0
        %v1591 = vsel %vm1575, %v1509, 0.0
        %v1592 = vsel %vm1576, %v1510, 0.0
        %v1593 = vsel %vm1576, %v1511, 0.0
        %v1594 = vsel %vm1577, %v1512, 0.0
        %v1595 = vsel %vm1577, %v1513, 0.0
        %v1596 = vsel %vm1578, %v1514, 0.0
        %v1597 = vsel %vm1578, %v1515, 0.0
        %v1598 = vsel %vm1579, %v1516, 0.0
        %v1599 = vsel %vm1579, %v1517, 0.0
        %v1620 = vrot.slane %v1580, 7
        %v1621 = vrot.slane %v1581, 7
        %v1622 = vsel %vm509, %v1620, %v1621
        %v1623 = vrot.slane %v1582, 7
        %v1624 = vrot.slane %v1583, 7
        %v1625 = vsel %vm509, %v1623, %v1624
        %v1626 = vrot.slane %v1584, 7
        %v1627 = vrot.slane %v1585, 7
        %v1628 = vsel %vm509, %v1626, %v1627
        %v1629 = vrot.slane %v1586, 7
        %v1630 = vrot.slane %v1587, 7
        %v1631 = vsel %vm509, %v1629, %v1630
        %v1632 = vrot.slane %v1588, 7
        %v1633 = vrot.slane %v1589, 7
        %v1634 = vsel %vm509, %v1632, %v1633
        %v1635 = vrot.slane %v1590, 7
        %v1636 = vrot.slane %v1591, 7
        %v1637 = vsel %vm509, %v1635, %v1636
        %v1638 = vrot.slane %v1592, 7
        %v1639 = vrot.slane %v1593, 7
        %v1640 = vsel %vm509, %v1638, %v1639
        %v1641 = vrot.slane %v1594, 7
        %v1642 = vrot.slane %v1595, 7
        %v1643 = vsel %vm509, %v1641, %v1642
        %v1644 = vrot.slane %v1596, 7
        %v1645 = vrot.slane %v1597, 7
        %v1646 = vsel %vm509, %v1644, %v1645
        %v1647 = vrot.slane %v1598, 7
        %v1648 = vrot.slane %v1599, 7
        %v1649 = vsel %vm509, %v1647, %v1648
        %v1670 = vsel %vm509, 0.0, %v1620
        %v1671 = vsel %vm509, 0.0, %v1623
        %v1672 = vsel %vm509, 0.0, %v1626
        %v1673 = vsel %vm509, 0.0, %v1629
        %v1674 = vsel %vm509, 0.0, %v1632
        %v1675 = vsel %vm509, 0.0, %v1635
        %v1676 = vsel %vm509, 0.0, %v1638
        %v1677 = vsel %vm509, 0.0, %v1641
        %v1678 = vsel %vm509, 0.0, %v1644
        %v1679 = vsel %vm509, 0.0, %v1647
        %v1680 = vrot.slane %v1580, 1
        %v1681 = vrot.slane %v1581, 1
        %v1682 = vsel %vm582, %v1680, %v1681
        %v1683 = vrot.slane %v1582, 1
        %v1684 = vrot.slane %v1583, 1
        %v1685 = vsel %vm582, %v1683, %v1684
        %v1686 = vrot.slane %v1584, 1
        %v1687 = vrot.slane %v1585, 1
        %v1688 = vsel %vm582, %v1686, %v1687
        %v1689 = vrot.slane %v1586, 1
        %v1690 = vrot.slane %v1587, 1
        %v1691 = vsel %vm582, %v1689, %v1690
        %v1692 = vrot.slane %v1588, 1
        %v1693 = vrot.slane %v1589, 1
        %v1694 = vsel %vm582, %v1692, %v1693
        %v1695 = vrot.slane %v1590, 1
        %v1696 = vrot.slane %v1591, 1
        %v1697 = vsel %vm582, %v1695, %v1696
        %v1698 = vrot.slane %v1592, 1
        %v1699 = vrot.slane %v1593, 1
        %v1700 = vsel %vm582, %v1698, %v1699
        %v1701 = vrot.slane %v1594, 1
        %v1702 = vrot.slane %v1595, 1
        %v1703 = vsel %vm582, %v1701, %v1702
        %v1704 = vrot.slane %v1596, 1
        %v1705 = vrot.slane %v1597, 1
        %v1706 = vsel %vm582, %v1704, %v1705
        %v1707 = vrot.slane %v1598, 1
        %v1708 = vrot.slane %v1599, 1
        %v1709 = vsel %vm582, %v1707, %v1708
        %v1730 = vsel %vm582, %v1681, 0.0
        %v1731 = vsel %vm582, %v1684, 0.0
        %v1732 = vsel %vm582, %v1687, 0.0
        %v1733 = vsel %vm582, %v1690, 0.0
        %v1734 = vsel %vm582, %v1693, 0.0
        %v1735 = vsel %vm582, %v1696, 0.0
        %v1736 = vsel %vm582, %v1699, 0.0
        %v1737 = vsel %vm582, %v1702, 0.0
        %v1738 = vsel %vm582, %v1705, 0.0
        %v1739 = vsel %vm582, %v1708, 0.0
        %v1740 = vld [vmem:[%s4] sm:$0xff]
        %v1741 = vld [vmem:[%s4 + $0x8] sm:$0xff]
        %v1742 = vld [vmem:[%s4 + $0x10] sm:$0xff]
        %v1743 = vld [vmem:[%s4 + $0x18] sm:$0xff]
        %v1744 = vld [vmem:[%s4 + $0x20] sm:$0xff]
        %v1745 = vld [vmem:[%s4 + $0x28] sm:$0xff]
        %v1746 = vld [vmem:[%s4 + $0x30] sm:$0xff]
        %v1747 = vld [vmem:[%s4 + $0x38] sm:$0xff]
        %v1748 = vld [vmem:[%s4 + $0x40] sm:$0xff]
        %v1749 = vld [vmem:[%s4 + $0x48] sm:$0xff]
        %v1750 = vld [vmem:[%s4 + $0x50] sm:$0xff]
        %v1751 = vld [vmem:[%s4 + $0x58] sm:$0xff]
        %v1752 = vld [vmem:[%s4 + $0x60] sm:$0xff]
        %v1753 = vld [vmem:[%s4 + $0x68] sm:$0xff]
        %v1754 = vld [vmem:[%s4 + $0x70] sm:$0xff]
        %v1755 = vld [vmem:[%s4 + $0x78] sm:$0xff]
        %v1756 = vld [vmem:[%s4 + $0x80] sm:$0xff]
        %v1757 = vld [vmem:[%s4 + $0x88] sm:$0xff]
        %v1758 = vld [vmem:[%s4 + $0x90] sm:$0xff]
        %v1759 = vld [vmem:[%s4 + $0x98] sm:$0xff]
        %v1760 = vld [vmem:[%s4 + $0xa0] sm:$0xff]
        %v1761 = vld [vmem:[%s4 + $0xa8] sm:$0xff]
        %v1762 = vld [vmem:[%s4 + $0xb0] sm:$0xff]
        %v1763 = vld [vmem:[%s4 + $0xb8] sm:$0xff]
        %v1764 = vld [vmem:[%s4 + $0xc0] sm:$0xff]
        %v1765 = vld [vmem:[%s4 + $0xc8] sm:$0xff]
        %v1766 = vld [vmem:[%s4 + $0xd0] sm:$0xff]
        %v1767 = vld [vmem:[%s4 + $0xd8] sm:$0xff]
        %v1768 = vld [vmem:[%s4 + $0xe0] sm:$0xff]
        %v1769 = vld [vmem:[%s4 + $0xe8] sm:$0xff]
        %v1770 = vld [vmem:[%s4 + $0xf0] sm:$0xff]
        %v1771 = vld [vmem:[%s4 + $0xf8] sm:$0xff]
        %v1772 = vld [vmem:[%s4 + $0x100] sm:$0xff]
        %v1773 = vld [vmem:[%s4 + $0x108] sm:$0xff]
        %v1774 = vld [vmem:[%s4 + $0x110] sm:$0xff]
        %v1775 = vld [vmem:[%s4 + $0x118] sm:$0xff]
        %v1776 = vld [vmem:[%s4 + $0x120] sm:$0xff]
        %v1777 = vld [vmem:[%s4 + $0x128] sm:$0xff]
        %v1778 = vld [vmem:[%s4 + $0x130] sm:$0xff]
        %v1779 = vld [vmem:[%s4 + $0x138] sm:$0xff]
        %v1780 = vld [vmem:[%s4 + $0x140] sm:$0xff]
        %v1781 = vld [vmem:[%s4 + $0x148] sm:$0xff]
        %v1782 = vld [vmem:[%s4 + $0x150] sm:$0xff]
        %v1783 = vld [vmem:[%s4 + $0x158] sm:$0xff]
        %v1784 = vld [vmem:[%s4 + $0x160] sm:$0xff]
        %v1785 = vld [vmem:[%s4 + $0x168] sm:$0xff]
        %v1786 = vld [vmem:[%s4 + $0x170] sm:$0xff]
        %v1787 = vld [vmem:[%s4 + $0x178] sm:$0xff]
        %s1788 = scalar_lea.vmem %s4, 384
        %v1789 = vld [vmem:[%s1788] sm:$0xff]
        %v1790 = vld [vmem:[%s1788 + $0x8] sm:$0xff]
        %v1791 = vld [vmem:[%s1788 + $0x10] sm:$0xff]
        %v1792 = vld [vmem:[%s1788 + $0x18] sm:$0xff]
        %v1793 = vld [vmem:[%s1788 + $0x20] sm:$0xff]
        %v1794 = vld [vmem:[%s1788 + $0x28] sm:$0xff]
        %v1795 = vld [vmem:[%s1788 + $0x30] sm:$0xff]
        %v1796 = vld [vmem:[%s1788 + $0x38] sm:$0xff]
        %v1797 = vld [vmem:[%s1788 + $0x40] sm:$0xff]
        %v1798 = vld [vmem:[%s1788 + $0x48] sm:$0xff]
        %v1799 = vld [vmem:[%s1788 + $0x50] sm:$0xff]
        %v1800 = vld [vmem:[%s1788 + $0x58] sm:$0xff]
        %v1801 = vld [vmem:[%s1788 + $0x60] sm:$0xff]
        %v1802 = vld [vmem:[%s1788 + $0x68] sm:$0xff]
        %v1803 = vld [vmem:[%s1788 + $0x70] sm:$0xff]
        %v1804 = vld [vmem:[%s1788 + $0x78] sm:$0xff]
        %v1805 = vld [vmem:[%s1788 + $0x80] sm:$0xff]
        %v1806 = vld [vmem:[%s1788 + $0x88] sm:$0xff]
        %v1807 = vld [vmem:[%s1788 + $0x90] sm:$0xff]
        %v1808 = vld [vmem:[%s1788 + $0x98] sm:$0xff]
        %v1809 = vld [vmem:[%s1788 + $0xa0] sm:$0xff]
        %v1810 = vld [vmem:[%s1788 + $0xa8] sm:$0xff]
        %v1811 = vld [vmem:[%s1788 + $0xb0] sm:$0xff]
        %v1812 = vld [vmem:[%s1788 + $0xb8] sm:$0xff]
        %v1813 = vld [vmem:[%s1788 + $0xc0] sm:$0xff]
        %v1814 = vld [vmem:[%s1788 + $0xc8] sm:$0xff]
        %v1815 = vld [vmem:[%s1788 + $0xd0] sm:$0xff]
        %v1816 = vld [vmem:[%s1788 + $0xd8] sm:$0xff]
        %v1817 = vld [vmem:[%s1788 + $0xe0] sm:$0xff]
        %v1818 = vld [vmem:[%s1788 + $0xe8] sm:$0xff]
        %v1819 = vld [vmem:[%s1788 + $0xf0] sm:$0xff]
        %v1820 = vld [vmem:[%s1788 + $0xf8] sm:$0xff]
        %v1821 = vld [vmem:[%s1788 + $0x100] sm:$0xff]
        %v1822 = vld [vmem:[%s1788 + $0x108] sm:$0xff]
        %v1823 = vld [vmem:[%s1788 + $0x110] sm:$0xff]
        %v1824 = vld [vmem:[%s1788 + $0x118] sm:$0xff]
        %v1825 = vld [vmem:[%s1788 + $0x120] sm:$0xff]
        %v1826 = vld [vmem:[%s1788 + $0x128] sm:$0xff]
        %v1827 = vld [vmem:[%s1788 + $0x130] sm:$0xff]
        %v1828 = vld [vmem:[%s1788 + $0x138] sm:$0xff]
        %v1829 = vld [vmem:[%s1788 + $0x140] sm:$0xff]
        %v1830 = vld [vmem:[%s1788 + $0x148] sm:$0xff]
        %v1831 = vld [vmem:[%s1788 + $0x150] sm:$0xff]
        %v1832 = vld [vmem:[%s1788 + $0x158] sm:$0xff]
        %v1833 = vld [vmem:[%s1788 + $0x160] sm:$0xff]
        %v1834 = vld [vmem:[%s1788 + $0x168] sm:$0xff]
        %v1835 = vld [vmem:[%s1788 + $0x170] sm:$0xff]
        %v1836 = vld [vmem:[%s1788 + $0x178] sm:$0xff]
        %1837 = vmatprep.subr.mxu0 0.0
        %1838 = vmatpush1.msra.mxu0 %v1789
        %1839 = vmatprep.subr.mxu0 0.0
        %1840 = vmatpush1.msra.mxu0 %v1790
        %1841 = vmatprep.subr.mxu0 0.0
        %1842 = vmatpush1.msra.mxu0 %v1791
        %1843 = vmatprep.subr.mxu0 0.0
        %1844 = vmatpush1.msra.mxu0 %v1792
        %1845 = vmatprep.subr.mxu0 0.0
        %1846 = vmatpush1.msra.mxu0 %v1793
        %1847 = vmatprep.subr.mxu0 0.0
        %1848 = vmatpush1.msra.mxu0 %v1794
        %1849 = vmatprep.subr.mxu0 0.0
        %1850 = vmatpush1.msra.mxu0 %v1795
        %1851 = vmatprep.subr.mxu0 0.0
        %1852 = vmatpush1.msra.mxu0 %v1796
        %1853 = vmatprep.subr.mxu0 0.0
        %1854 = vmatpush1.msra.mxu0 %v1797
        %1855 = vmatprep.subr.mxu0 0.0
        %1856 = vmatpush1.msra.mxu0 %v1798
        %1857 = vmatprep.subr.mxu0 0.0
        %1858 = vmatpush1.msra.mxu0 %v1799
        %1859 = vmatprep.subr.mxu0 0.0
        %1860 = vmatpush1.msra.mxu0 %v1800
        %1861 = vmatprep.subr.mxu0 0.0
        %1862 = vmatpush1.msra.mxu0 %v1801
        %1863 = vmatprep.subr.mxu0 0.0
        %1864 = vmatpush1.msra.mxu0 %v1802
        %1865 = vmatprep.subr.mxu0 0.0
        %1866 = vmatpush1.msra.mxu0 %v1803
        %1867 = vmatprep.subr.mxu0 0.0
        %1868 = vmatpush1.msra.mxu0 %v1804
        %1869 = vmatprep.subr.mxu0 0.0
        %1870 = vmatpush1.msra.mxu0 %v1805
        %1871 = vmatprep.subr.mxu0 0.0
        %1872 = vmatpush1.msra.mxu0 %v1806
        %1873 = vmatprep.subr.mxu0 0.0
        %1874 = vmatpush1.msra.mxu0 %v1807
        %1875 = vmatprep.subr.mxu0 0.0
        %1876 = vmatpush1.msra.mxu0 %v1808
        %1877 = vmatprep.subr.mxu0 0.0
        %1878 = vmatpush1.msra.mxu0 %v1809
        %1879 = vmatprep.subr.mxu0 0.0
        %1880 = vmatpush1.msra.mxu0 %v1810
        %1881 = vmatprep.subr.mxu0 0.0
        %1882 = vmatpush1.msra.mxu0 %v1811
        %1883 = vmatprep.subr.mxu0 0.0
        %1884 = vmatpush1.msra.mxu0 %v1812
        %1885 = vmatprep.subr.mxu0 0.0
        %1886 = vmatpush1.msra.mxu0 %v1813
        %1887 = vmatprep.subr.mxu0 0.0
        %1888 = vmatpush1.msra.mxu0 %v1814
        %1889 = vmatprep.subr.mxu0 0.0
        %1890 = vmatpush1.msra.mxu0 %v1815
        %1891 = vmatprep.subr.mxu0 0.0
        %1892 = vmatpush1.msra.mxu0 %v1816
        %1893 = vmatprep.subr.mxu0 0.0
        %1894 = vmatpush1.msra.mxu0 %v1817
        %1895 = vmatprep.subr.mxu0 0.0
        %1896 = vmatpush1.msra.mxu0 %v1818
        %1897 = vmatprep.subr.mxu0 0.0
        %1898 = vmatpush1.msra.mxu0 %v1819
        %1899 = vmatprep.subr.mxu0 0.0
        %1900 = vmatpush1.msra.mxu0 %v1820
        %1901 = vmatprep.mubr.f32.mxu0 %v1582
        %1902 = vmatmul.mubr.f32.gmra.mrb[0].mxu0 %v1671
        %v1903 = vpop.f32.mrb[0].mxu0
        %v1904 = vadd.f32 0.0, %v1903
        %v1905 = vpop.f32.mrb[0].mxu0
        %1906 = vmatprep.mubr.f32.mxu0 %v1583
        %1907 = vmatmul.mubr.f32.gmra.mrb[0].mxu0 %v1625
        %v1908 = vpop.f32.mrb[0].mxu0
        %v1909 = vadd.f32 0.0, %v1908
        %v1910 = vpop.f32.mrb[0].mxu0
        %1911 = vmatprep.mubr.f32.mxu0 %v1584
        %1912 = vmatmul.mubr.f32.gmra.mrb[0].mxu0 %v1672
        %v1913 = vpop.f32.mrb[0].mxu0
        %v1914 = vadd.f32 0.0, %v1913
        %v1915 = vpop.f32.mrb[0].mxu0
        %1916 = vmatprep.mubr.f32.mxu0 %v1585
        %1917 = vmatmul.mubr.f32.gmra.mrb[0].mxu0 %v1628
        %v1918 = vpop.f32.mrb[0].mxu0
        %v1919 = vadd.f32 0.0, %v1918
        %v1920 = vpop.f32.mrb[0].mxu0
        %1921 = vmatprep.mubr.f32.mxu0 %v1586
        %1922 = vmatmul.mubr.f32.gmra.mrb[0].mxu0 %v1673
        %v1923 = vpop.f32.mrb[0].mxu0
        %v1924 = vadd.f32 0.0, %v1923
        %v1925 = vpop.f32.mrb[0].mxu0
        %1926 = vmatprep.mubr.f32.mxu0 %v1587
        %1927 = vmatmul.mubr.f32.gmra.mrb[0].mxu0 %v1631
        %v1928 = vpop.f32.mrb[0].mxu0
        %v1929 = vadd.f32 0.0, %v1928
        %v1930 = vpop.f32.mrb[0].mxu0
        %1931 = vmatprep.mubr.f32.mxu0 %v1588
        %1932 = vmatmul.mubr.f32.gmra.mrb[0].mxu0 %v1674
        %v1933 = vpop.f32.mrb[0].mxu0
        %v1934 = vadd.f32 0.0, %v1933
        %v1935 = vpop.f32.mrb[0].mxu0
        %1936 = vmatprep.mubr.f32.mxu0 %v1589
        %1937 = vmatmul.mubr.f32.gmra.mrb[0].mxu0 %v1634
        %v1938 = vpop.f32.mrb[0].mxu0
        %v1939 = vadd.f32 0.0, %v1938
        %v1940 = vpop.f32.mrb[0].mxu0
        %1941 = vmatprep.mubr.f32.mxu0 %v1590
        %1942 = vmatmul.mubr.f32.gmra.mrb[0].mxu0 %v1675
        %v1943 = vpop.f32.mrb[0].mxu0
        %v1944 = vadd.f32 0.0, %v1943
        %v1945 = vpop.f32.mrb[0].mxu0
        %1946 = vmatprep.mubr.f32.mxu0 %v1591
        %1947 = vmatmul.mubr.f32.gmra.mrb[0].mxu0 %v1637
        %v1948 = vpop.f32.mrb[0].mxu0
        %v1949 = vadd.f32 0.0, %v1948
        %v1950 = vpop.f32.mrb[0].mxu0
        %1951 = vmatprep.mubr.f32.mxu0 %v1592
        %1952 = vmatmul.mubr.f32.gmra.mrb[0].mxu0 %v1676
        %v1953 = vpop.f32.mrb[0].mxu0
        %v1954 = vadd.f32 0.0, %v1953
        %v1955 = vpop.f32.mrb[0].mxu0
        %1956 = vmatprep.mubr.f32.mxu0 %v1593
        %1957 = vmatmul.mubr.f32.gmra.mrb[0].mxu0 %v1640
        %v1958 = vpop.f32.mrb[0].mxu0
        %v1959 = vadd.f32 0.0, %v1958
        %v1960 = vpop.f32.mrb[0].mxu0
        %1961 = vmatprep.mubr.f32.mxu0 %v1594
        %1962 = vmatmul.mubr.f32.gmra.mrb[0].mxu0 %v1677
        %v1963 = vpop.f32.mrb[0].mxu0
        %v1964 = vadd.f32 0.0, %v1963
        %v1965 = vpop.f32.mrb[0].mxu0
        %1966 = vmatprep.mubr.f32.mxu0 %v1595
        %1967 = vmatmul.mubr.f32.gmra.mrb[0].mxu0 %v1643
        %v1968 = vpop.f32.mrb[0].mxu0
        %v1969 = vadd.f32 0.0, %v1968
        %v1970 = vpop.f32.mrb[0].mxu0
        %1971 = vmatprep.mubr.f32.mxu0 %v1596
        %1972 = vmatmul.mubr.f32.gmra.mrb[0].mxu0 %v1678
        %v1973 = vpop.f32.mrb[0].mxu0
        %v1974 = vadd.f32 0.0, %v1973
        %v1975 = vpop.f32.mrb[0].mxu0
        %1976 = vmatprep.mubr.f32.mxu0 %v1597
        %1977 = vmatmul.mubr.f32.gmra.mrb[0].mxu0 %v1646
        %v1978 = vpop.f32.mrb[0].mxu0
        %v1979 = vadd.f32 0.0, %v1978
        %v1980 = vpop.f32.mrb[0].mxu0
        %1981 = vdwg.mxu0
        %1982 = vmatprep.subr.mxu0 0.0
        %1983 = vmatpush1.msra.mxu0 %v1821
        %1984 = vmatprep.subr.mxu0 0.0
        %1985 = vmatpush1.msra.mxu0 %v1822
        %1986 = vmatprep.subr.mxu0 0.0
        %1987 = vmatpush1.msra.mxu0 %v1823
        %1988 = vmatprep.subr.mxu0 0.0
        %1989 = vmatpush1.msra.mxu0 %v1824
        %1990 = vmatprep.subr.mxu0 0.0
        %1991 = vmatpush1.msra.mxu0 %v1825
        %1992 = vmatprep.subr.mxu0 0.0
        %1993 = vmatpush1.msra.mxu0 %v1826
        %1994 = vmatprep.subr.mxu0 0.0
        %1995 = vmatpush1.msra.mxu0 %v1827
        %1996 = vmatprep.subr.mxu0 0.0
        %1997 = vmatpush1.msra.mxu0 %v1828
        %1998 = vmatprep.subr.mxu0 0.0
        %1999 = vmatpush1.msra.mxu0 %v1829
        %2000 = vmatprep.subr.mxu0 0.0
        %2001 = vmatpush1.msra.mxu0 %v1830
        %2002 = vmatprep.subr.mxu0 0.0
        %2003 = vmatpush1.msra.mxu0 %v1831
        %2004 = vmatprep.subr.mxu0 0.0
        %2005 = vmatpush1.msra.mxu0 %v1832
        %2006 = vmatprep.subr.mxu0 0.0
        %2007 = vmatpush1.msra.mxu0 %v1833
        %2008 = vmatprep.subr.mxu0 0.0
        %2009 = vmatpush1.msra.mxu0 %v1834
        %2010 = vmatprep.subr.mxu0 0.0
        %2011 = vmatpush1.msra.mxu0 %v1835
        %2012 = vmatprep.subr.mxu0 0.0
        %2013 = vmatpush1.msra.mxu0 %v1836
        %2014 = vmatprep.subr.mxu0 0.0
        %2015 = vmatpush1.msra.mxu0 0.0
        %2016 = vmatprep.subr.mxu0 0.0
        %2017 = vmatpush1.msra.mxu0 0.0
        %2018 = vmatprep.subr.mxu0 0.0
        %2019 = vmatpush1.msra.mxu0 0.0
        %2020 = vmatprep.subr.mxu0 0.0
        %2021 = vmatpush1.msra.mxu0 0.0
        %2022 = vmatprep.subr.mxu0 0.0
        %2023 = vmatpush1.msra.mxu0 0.0
        %2024 = vmatprep.subr.mxu0 0.0
        %2025 = vmatpush1.msra.mxu0 0.0
        %2026 = vmatprep.subr.mxu0 0.0
        %2027 = vmatpush1.msra.mxu0 0.0
        %2028 = vmatprep.subr.mxu0 0.0
        %2029 = vmatpush1.msra.mxu0 0.0
        %2030 = vmatprep.subr.mxu0 0.0
        %2031 = vmatpush1.msra.mxu0 0.0
        %2032 = vmatprep.subr.mxu0 0.0
        %2033 = vmatpush1.msra.mxu0 0.0
        %2034 = vmatprep.subr.mxu0 0.0
        %2035 = vmatpush1.msra.mxu0 0.0
        %2036 = vmatprep.subr.mxu0 0.0
        %2037 = vmatpush1.msra.mxu0 0.0
        %2038 = vmatprep.subr.mxu0 0.0
        %2039 = vmatpush1.msra.mxu0 0.0
        %2040 = vmatprep.subr.mxu0 0.0
        %2041 = vmatpush1.msra.mxu0 0.0
        %2042 = vmatprep.subr.mxu0 0.0
        %2043 = vmatpush1.msra.mxu0 0.0
        %2044 = vmatprep.subr.mxu0 0.0
        %2045 = vmatpush1.msra.mxu0 0.0
        %2046 = vmatprep.mubr.f32.mxu0 0.0
        %2047 = vmatmul.mubr.f32.gmra.mrb[0].mxu0 %v1685
        %v2048 = vpop.f32.mrb[0].mxu0
        %v2049 = vadd.f32 %v1904, %v2048
        %v2050 = vpop.f32.mrb[0].mxu0
        %2051 = vmatprep.mubr.f32.mxu0 0.0
        %2052 = vmatmul.mubr.f32.gmra.mrb[0].mxu0 %v1731
        %v2053 = vpop.f32.mrb[0].mxu0
        %v2054 = vadd.f32 %v1909, %v2053
        %v2055 = vpop.f32.mrb[0].mxu0
        %2056 = vmatprep.mubr.f32.mxu0 0.0
        %2057 = vmatmul.mubr.f32.gmra.mrb[0].mxu0 %v1688
        %v2058 = vpop.f32.mrb[0].mxu0
        %v2059 = vadd.f32 %v1914, %v2058
        %v2060 = vpop.f32.mrb[0].mxu0
        %2061 = vmatprep.mubr.f32.mxu0 0.0
        %2062 = vmatmul.mubr.f32.gmra.mrb[0].mxu0 %v1732
        %v2063 = vpop.f32.mrb[0].mxu0
        %v2064 = vadd.f32 %v1919, %v2063
        %v2065 = vpop.f32.mrb[0].mxu0
        %2066 = vmatprep.mubr.f32.mxu0 0.0
        %2067 = vmatmul.mubr.f32.gmra.mrb[0].mxu0 %v1691
        %v2068 = vpop.f32.mrb[0].mxu0
        %v2069 = vadd.f32 %v1924, %v2068
        %v2070 = vpop.f32.mrb[0].mxu0
        %2071 = vmatprep.mubr.f32.mxu0 0.0
        %2072 = vmatmul.mubr.f32.gmra.mrb[0].mxu0 %v1733
        %v2073 = vpop.f32.mrb[0].mxu0
        %v2074 = vadd.f32 %v1929, %v2073
        %v2075 = vpop.f32.mrb[0].mxu0
        %2076 = vmatprep.mubr.f32.mxu0 0.0
        %2077 = vmatmul.mubr.f32.gmra.mrb[0].mxu0 %v1694
        %v2078 = vpop.f32.mrb[0].mxu0
        %v2079 = vadd.f32 %v1934, %v2078
        %v2080 = vpop.f32.mrb[0].mxu0
        %2081 = vmatprep.mubr.f32.mxu0 0.0
        %2082 = vmatmul.mubr.f32.gmra.mrb[0].mxu0 %v1734
        %v2083 = vpop.f32.mrb[0].mxu0
        %v2084 = vadd.f32 %v1939, %v2083
        %v2085 = vpop.f32.mrb[0].mxu0
        %2086 = vmatprep.mubr.f32.mxu0 0.0
        %2087 = vmatmul.mubr.f32.gmra.mrb[0].mxu0 %v1697
        %v2088 = vpop.f32.mrb[0].mxu0
        %v2089 = vadd.f32 %v1944, %v2088
        %v2090 = vpop.f32.mrb[0].mxu0
        %2091 = vmatprep.mubr.f32.mxu0 0.0
        %2092 = vmatmul.mubr.f32.gmra.mrb[0].mxu0 %v1735
        %v2093 = vpop.f32.mrb[0].mxu0
        %v2094 = vadd.f32 %v1949, %v2093
        %v2095 = vpop.f32.mrb[0].mxu0
        %2096 = vmatprep.mubr.f32.mxu0 0.0
        %2097 = vmatmul.mubr.f32.gmra.mrb[0].mxu0 %v1700
        %v2098 = vpop.f32.mrb[0].mxu0
        %v2099 = vadd.f32 %v1954, %v2098
        %v2100 = vpop.f32.mrb[0].mxu0
        %2101 = vmatprep.mubr.f32.mxu0 0.0
        %2102 = vmatmul.mubr.f32.gmra.mrb[0].mxu0 %v1736
        %v2103 = vpop.f32.mrb[0].mxu0
        %v2104 = vadd.f32 %v1959, %v2103
        %v2105 = vpop.f32.mrb[0].mxu0
        %2106 = vmatprep.mubr.f32.mxu0 0.0
        %2107 = vmatmul.mubr.f32.gmra.mrb[0].mxu0 %v1703
        %v2108 = vpop.f32.mrb[0].mxu0
        %v2109 = vadd.f32 %v1964, %v2108
        %v2110 = vpop.f32.mrb[0].mxu0
        %2111 = vmatprep.mubr.f32.mxu0 0.0
        %2112 = vmatmul.mubr.f32.gmra.mrb[0].mxu0 %v1737
        %v2113 = vpop.f32.mrb[0].mxu0
        %v2114 = vadd.f32 %v1969, %v2113
        %v2115 = vpop.f32.mrb[0].mxu0
        %2116 = vmatprep.mubr.f32.mxu0 0.0
        %2117 = vmatmul.mubr.f32.gmra.mrb[0].mxu0 %v1706
        %v2118 = vpop.f32.mrb[0].mxu0
        %v2119 = vadd.f32 %v1974, %v2118
        %v2120 = vpop.f32.mrb[0].mxu0
        %2121 = vmatprep.mubr.f32.mxu0 0.0
        %2122 = vmatmul.mubr.f32.gmra.mrb[0].mxu0 %v1738
        %v2123 = vpop.f32.mrb[0].mxu0
        %v2124 = vadd.f32 %v1979, %v2123
        %v2125 = vpop.f32.mrb[0].mxu0
        %2126 = vdwg.mxu0
        %2127 = vmatprep.subr.mxu0 0.0
        %2128 = vmatpush1.msra.mxu0 %v1740
        %2129 = vmatprep.subr.mxu0 0.0
        %2130 = vmatpush1.msra.mxu0 %v1741
        %2131 = vmatprep.subr.mxu0 0.0
        %2132 = vmatpush1.msra.mxu0 %v1742
        %2133 = vmatprep.subr.mxu0 0.0
        %2134 = vmatpush1.msra.mxu0 %v1743
        %2135 = vmatprep.subr.mxu0 0.0
        %2136 = vmatpush1.msra.mxu0 %v1744
        %2137 = vmatprep.subr.mxu0 0.0
        %2138 = vmatpush1.msra.mxu0 %v1745
        %2139 = vmatprep.subr.mxu0 0.0
        %2140 = vmatpush1.msra.mxu0 %v1746
        %2141 = vmatprep.subr.mxu0 0.0
        %2142 = vmatpush1.msra.mxu0 %v1747
        %2143 = vmatprep.subr.mxu0 0.0
        %2144 = vmatpush1.msra.mxu0 %v1748
        %2145 = vmatprep.subr.mxu0 0.0
        %2146 = vmatpush1.msra.mxu0 %v1749
        %2147 = vmatprep.subr.mxu0 0.0
        %2148 = vmatpush1.msra.mxu0 %v1750
        %2149 = vmatprep.subr.mxu0 0.0
        %2150 = vmatpush1.msra.mxu0 %v1751
        %2151 = vmatprep.subr.mxu0 0.0
        %2152 = vmatpush1.msra.mxu0 %v1752
        %2153 = vmatprep.subr.mxu0 0.0
        %2154 = vmatpush1.msra.mxu0 %v1753
        %2155 = vmatprep.subr.mxu0 0.0
        %2156 = vmatpush1.msra.mxu0 %v1754
        %2157 = vmatprep.subr.mxu0 0.0
        %2158 = vmatpush1.msra.mxu0 %v1755
        %2159 = vmatprep.subr.mxu0 0.0
        %2160 = vmatpush1.msra.mxu0 %v1756
        %2161 = vmatprep.subr.mxu0 0.0
        %2162 = vmatpush1.msra.mxu0 %v1757
        %2163 = vmatprep.subr.mxu0 0.0
        %2164 = vmatpush1.msra.mxu0 %v1758
        %2165 = vmatprep.subr.mxu0 0.0
        %2166 = vmatpush1.msra.mxu0 %v1759
        %2167 = vmatprep.subr.mxu0 0.0
        %2168 = vmatpush1.msra.mxu0 %v1760
        %2169 = vmatprep.subr.mxu0 0.0
        %2170 = vmatpush1.msra.mxu0 %v1761
        %2171 = vmatprep.subr.mxu0 0.0
        %2172 = vmatpush1.msra.mxu0 %v1762
        %2173 = vmatprep.subr.mxu0 0.0
        %2174 = vmatpush1.msra.mxu0 %v1763
        %2175 = vmatprep.subr.mxu0 0.0
        %2176 = vmatpush1.msra.mxu0 %v1764
        %2177 = vmatprep.subr.mxu0 0.0
        %2178 = vmatpush1.msra.mxu0 %v1765
        %2179 = vmatprep.subr.mxu0 0.0
        %2180 = vmatpush1.msra.mxu0 %v1766
        %2181 = vmatprep.subr.mxu0 0.0
        %2182 = vmatpush1.msra.mxu0 %v1767
        %2183 = vmatprep.subr.mxu0 0.0
        %2184 = vmatpush1.msra.mxu0 %v1768
        %2185 = vmatprep.subr.mxu0 0.0
        %2186 = vmatpush1.msra.mxu0 %v1769
        %2187 = vmatprep.subr.mxu0 0.0
        %2188 = vmatpush1.msra.mxu0 %v1770
        %2189 = vmatprep.subr.mxu0 0.0
        %2190 = vmatpush1.msra.mxu0 %v1771
        %2191 = vmatprep.mubr.f32.mxu0 %v1580
        %2192 = vmatmul.mubr.f32.gmra.mrb[0].mxu0 %v1670
        %v2193 = vpop.f32.mrb[0].mxu0
        %v2194 = vadd.f32 %v2049, %v2193
        %v2195 = vpop.f32.mrb[0].mxu0
        %2196 = vmatprep.mubr.f32.mxu0 %v1581
        %2197 = vmatmul.mubr.f32.gmra.mrb[0].mxu0 %v1622
        %v2198 = vpop.f32.mrb[0].mxu0
        %v2199 = vadd.f32 %v2054, %v2198
        %v2200 = vpop.f32.mrb[0].mxu0
        %2201 = vmatprep.mubr.f32.mxu0 %v1582
        %2202 = vmatmul.mubr.f32.gmra.mrb[0].mxu0 %v1671
        %v2203 = vpop.f32.mrb[0].mxu0
        %v2204 = vadd.f32 %v2059, %v2203
        %v2205 = vpop.f32.mrb[0].mxu0
        %2206 = vmatprep.mubr.f32.mxu0 %v1583
        %2207 = vmatmul.mubr.f32.gmra.mrb[0].mxu0 %v1625
        %v2208 = vpop.f32.mrb[0].mxu0
        %v2209 = vadd.f32 %v2064, %v2208
        %v2210 = vpop.f32.mrb[0].mxu0
        %2211 = vmatprep.mubr.f32.mxu0 %v1584
        %2212 = vmatmul.mubr.f32.gmra.mrb[0].mxu0 %v1672
        %v2213 = vpop.f32.mrb[0].mxu0
        %v2214 = vadd.f32 %v2069, %v2213
        %v2215 = vpop.f32.mrb[0].mxu0
        %2216 = vmatprep.mubr.f32.mxu0 %v1585
        %2217 = vmatmul.mubr.f32.gmra.mrb[0].mxu0 %v1628
        %v2218 = vpop.f32.mrb[0].mxu0
        %v2219 = vadd.f32 %v2074, %v2218
        %v2220 = vpop.f32.mrb[0].mxu0
        %2221 = vmatprep.mubr.f32.mxu0 %v1586
        %2222 = vmatmul.mubr.f32.gmra.mrb[0].mxu0 %v1673
        %v2223 = vpop.f32.mrb[0].mxu0
        %v2224 = vadd.f32 %v2079, %v2223
        %v2225 = vpop.f32.mrb[0].mxu0
        %2226 = vmatprep.mubr.f32.mxu0 %v1587
        %2227 = vmatmul.mubr.f32.gmra.mrb[0].mxu0 %v1631
        %v2228 = vpop.f32.mrb[0].mxu0
        %v2229 = vadd.f32 %v2084, %v2228
        %v2230 = vpop.f32.mrb[0].mxu0
        %2231 = vmatprep.mubr.f32.mxu0 %v1588
        %2232 = vmatmul.mubr.f32.gmra.mrb[0].mxu0 %v1674
        %v2233 = vpop.f32.mrb[0].mxu0
        %v2234 = vadd.f32 %v2089, %v2233
        %v2235 = vpop.f32.mrb[0].mxu0
        %2236 = vmatprep.mubr.f32.mxu0 %v1589
        %2237 = vmatmul.mubr.f32.gmra.mrb[0].mxu0 %v1634
        %v2238 = vpop.f32.mrb[0].mxu0
        %v2239 = vadd.f32 %v2094, %v2238
        %v2240 = vpop.f32.mrb[0].mxu0
        %2241 = vmatprep.mubr.f32.mxu0 %v1590
        %2242 = vmatmul.mubr.f32.gmra.mrb[0].mxu0 %v1675
        %v2243 = vpop.f32.mrb[0].mxu0
        %v2244 = vadd.f32 %v2099, %v2243
        %v2245 = vpop.f32.mrb[0].mxu0
        %2246 = vmatprep.mubr.f32.mxu0 %v1591
        %2247 = vmatmul.mubr.f32.gmra.mrb[0].mxu0 %v1637
        %v2248 = vpop.f32.mrb[0].mxu0
        %v2249 = vadd.f32 %v2104, %v2248
        %v2250 = vpop.f32.mrb[0].mxu0
        %2251 = vmatprep.mubr.f32.mxu0 %v1592
        %2252 = vmatmul.mubr.f32.gmra.mrb[0].mxu0 %v1676
        %v2253 = vpop.f32.mrb[0].mxu0
        %v2254 = vadd.f32 %v2109, %v2253
        %v2255 = vpop.f32.mrb[0].mxu0
        %2256 = vmatprep.mubr.f32.mxu0 %v1593
        %2257 = vmatmul.mubr.f32.gmra.mrb[0].mxu0 %v1640
        %v2258 = vpop.f32.mrb[0].mxu0
        %v2259 = vadd.f32 %v2114, %v2258
        %v2260 = vpop.f32.mrb[0].mxu0
        %2261 = vmatprep.mubr.f32.mxu0 %v1594
        %2262 = vmatmul.mubr.f32.gmra.mrb[0].mxu0 %v1677
        %v2263 = vpop.f32.mrb[0].mxu0
        %v2264 = vadd.f32 %v2119, %v2263
        %v2265 = vpop.f32.mrb[0].mxu0
        %2266 = vmatprep.mubr.f32.mxu0 %v1595
        %2267 = vmatmul.mubr.f32.gmra.mrb[0].mxu0 %v1643
        %v2268 = vpop.f32.mrb[0].mxu0
        %v2269 = vadd.f32 %v2124, %v2268
        %v2270 = vpop.f32.mrb[0].mxu0
        %2271 = vdwg.mxu0
        %2272 = vmatprep.subr.mxu0 0.0
        %2273 = vmatpush1.msra.mxu0 %v1772
        %2274 = vmatprep.subr.mxu0 0.0
        %2275 = vmatpush1.msra.mxu0 %v1773
        %2276 = vmatprep.subr.mxu0 0.0
        %2277 = vmatpush1.msra.mxu0 %v1774
        %2278 = vmatprep.subr.mxu0 0.0
        %2279 = vmatpush1.msra.mxu0 %v1775
        %2280 = vmatprep.subr.mxu0 0.0
        %2281 = vmatpush1.msra.mxu0 %v1776
        %2282 = vmatprep.subr.mxu0 0.0
        %2283 = vmatpush1.msra.mxu0 %v1777
        %2284 = vmatprep.subr.mxu0 0.0
        %2285 = vmatpush1.msra.mxu0 %v1778
        %2286 = vmatprep.subr.mxu0 0.0
        %2287 = vmatpush1.msra.mxu0 %v1779
        %2288 = vmatprep.subr.mxu0 0.0
        %2289 = vmatpush1.msra.mxu0 %v1780
        %2290 = vmatprep.subr.mxu0 0.0
        %2291 = vmatpush1.msra.mxu0 %v1781
        %2292 = vmatprep.subr.mxu0 0.0
        %2293 = vmatpush1.msra.mxu0 %v1782
        %2294 = vmatprep.subr.mxu0 0.0
        %2295 = vmatpush1.msra.mxu0 %v1783
        %2296 = vmatprep.subr.mxu0 0.0
        %2297 = vmatpush1.msra.mxu0 %v1784
        %2298 = vmatprep.subr.mxu0 0.0
        %2299 = vmatpush1.msra.mxu0 %v1785
        %2300 = vmatprep.subr.mxu0 0.0
        %2301 = vmatpush1.msra.mxu0 %v1786
        %2302 = vmatprep.subr.mxu0 0.0
        %2303 = vmatpush1.msra.mxu0 %v1787
        %2304 = vmatprep.subr.mxu0 0.0
        %2305 = vmatpush1.msra.mxu0 0.0
        %2306 = vmatprep.subr.mxu0 0.0
        %2307 = vmatpush1.msra.mxu0 0.0
        %2308 = vmatprep.subr.mxu0 0.0
        %2309 = vmatpush1.msra.mxu0 0.0
        %2310 = vmatprep.subr.mxu0 0.0
        %2311 = vmatpush1.msra.mxu0 0.0
        %2312 = vmatprep.subr.mxu0 0.0
        %2313 = vmatpush1.msra.mxu0 0.0
        %2314 = vmatprep.subr.mxu0 0.0
        %2315 = vmatpush1.msra.mxu0 0.0
        %2316 = vmatprep.subr.mxu0 0.0
        %2317 = vmatpush1.msra.mxu0 0.0
        %2318 = vmatprep.subr.mxu0 0.0
        %2319 = vmatpush1.msra.mxu0 0.0
        %2320 = vmatprep.subr.mxu0 0.0
        %2321 = vmatpush1.msra.mxu0 0.0
        %2322 = vmatprep.subr.mxu0 0.0
        %2323 = vmatpush1.msra.mxu0 0.0
        %2324 = vmatprep.subr.mxu0 0.0
        %2325 = vmatpush1.msra.mxu0 0.0
        %2326 = vmatprep.subr.mxu0 0.0
        %2327 = vmatpush1.msra.mxu0 0.0
        %2328 = vmatprep.subr.mxu0 0.0
        %2329 = vmatpush1.msra.mxu0 0.0
        %2330 = vmatprep.subr.mxu0 0.0
        %2331 = vmatpush1.msra.mxu0 0.0
        %2332 = vmatprep.subr.mxu0 0.0
        %2333 = vmatpush1.msra.mxu0 0.0
        %2334 = vmatprep.subr.mxu0 0.0
        %2335 = vmatpush1.msra.mxu0 0.0
        %2336 = vmatprep.mubr.f32.mxu0 0.0
        %2337 = vmatmul.mubr.f32.gmra.mrb[0].mxu0 %v1682
        %v2338 = vpop.f32.mrb[0].mxu0
        %v2339 = vadd.f32 %v2194, %v2338
        %v2340 = vpop.f32.mrb[0].mxu0
        %2341 = vmatprep.mubr.f32.mxu0 0.0
        %2342 = vmatmul.mubr.f32.gmra.mrb[0].mxu0 %v1730
        %v2343 = vpop.f32.mrb[0].mxu0
        %v2344 = vadd.f32 %v2199, %v2343
        %v2345 = vpop.f32.mrb[0].mxu0
        %2346 = vmatprep.mubr.f32.mxu0 0.0
        %2347 = vmatmul.mubr.f32.gmra.mrb[0].mxu0 %v1685
        %v2348 = vpop.f32.mrb[0].mxu0
        %v2349 = vadd.f32 %v2204, %v2348
        %v2350 = vpop.f32.mrb[0].mxu0
        %2351 = vmatprep.mubr.f32.mxu0 0.0
        %2352 = vmatmul.mubr.f32.gmra.mrb[0].mxu0 %v1731
        %v2353 = vpop.f32.mrb[0].mxu0
        %v2354 = vadd.f32 %v2209, %v2353
        %v2355 = vpop.f32.mrb[0].mxu0
        %2356 = vmatprep.mubr.f32.mxu0 0.0
        %2357 = vmatmul.mubr.f32.gmra.mrb[0].mxu0 %v1688
        %v2358 = vpop.f32.mrb[0].mxu0
        %v2359 = vadd.f32 %v2214, %v2358
        %v2360 = vpop.f32.mrb[0].mxu0
        %2361 = vmatprep.mubr.f32.mxu0 0.0
        %2362 = vmatmul.mubr.f32.gmra.mrb[0].mxu0 %v1732
        %v2363 = vpop.f32.mrb[0].mxu0
        %v2364 = vadd.f32 %v2219, %v2363
        %v2365 = vpop.f32.mrb[0].mxu0
        %2366 = vmatprep.mubr.f32.mxu0 0.0
        %2367 = vmatmul.mubr.f32.gmra.mrb[0].mxu0 %v1691
        %v2368 = vpop.f32.mrb[0].mxu0
        %v2369 = vadd.f32 %v2224, %v2368
        %v2370 = vpop.f32.mrb[0].mxu0
        %2371 = vmatprep.mubr.f32.mxu0 0.0
        %2372 = vmatmul.mubr.f32.gmra.mrb[0].mxu0 %v1733
        %v2373 = vpop.f32.mrb[0].mxu0
        %v2374 = vadd.f32 %v2229, %v2373
        %v2375 = vpop.f32.mrb[0].mxu0
        %2376 = vmatprep.mubr.f32.mxu0 0.0
        %2377 = vmatmul.mubr.f32.gmra.mrb[0].mxu0 %v1694
        %v2378 = vpop.f32.mrb[0].mxu0
        %v2379 = vadd.f32 %v2234, %v2378
        %v2380 = vpop.f32.mrb[0].mxu0
        %2381 = vmatprep.mubr.f32.mxu0 0.0
        %2382 = vmatmul.mubr.f32.gmra.mrb[0].mxu0 %v1734
        %v2383 = vpop.f32.mrb[0].mxu0
        %v2384 = vadd.f32 %v2239, %v2383
        %v2385 = vpop.f32.mrb[0].mxu0
        %2386 = vmatprep.mubr.f32.mxu0 0.0
        %2387 = vmatmul.mubr.f32.gmra.mrb[0].mxu0 %v1697
        %v2388 = vpop.f32.mrb[0].mxu0
        %v2389 = vadd.f32 %v2244, %v2388
        %v2390 = vpop.f32.mrb[0].mxu0
        %2391 = vmatprep.mubr.f32.mxu0 0.0
        %2392 = vmatmul.mubr.f32.gmra.mrb[0].mxu0 %v1735
        %v2393 = vpop.f32.mrb[0].mxu0
        %v2394 = vadd.f32 %v2249, %v2393
        %v2395 = vpop.f32.mrb[0].mxu0
        %2396 = vmatprep.mubr.f32.mxu0 0.0
        %2397 = vmatmul.mubr.f32.gmra.mrb[0].mxu0 %v1700
        %v2398 = vpop.f32.mrb[0].mxu0
        %v2399 = vadd.f32 %v2254, %v2398
        %v2400 = vpop.f32.mrb[0].mxu0
        %2401 = vmatprep.mubr.f32.mxu0 0.0
        %2402 = vmatmul.mubr.f32.gmra.mrb[0].mxu0 %v1736
        %v2403 = vpop.f32.mrb[0].mxu0
        %v2404 = vadd.f32 %v2259, %v2403
        %v2405 = vpop.f32.mrb[0].mxu0
        %2406 = vmatprep.mubr.f32.mxu0 0.0
        %2407 = vmatmul.mubr.f32.gmra.mrb[0].mxu0 %v1703
        %v2408 = vpop.f32.mrb[0].mxu0
        %v2409 = vadd.f32 %v2264, %v2408
        %v2410 = vpop.f32.mrb[0].mxu0
        %2411 = vmatprep.mubr.f32.mxu0 0.0
        %2412 = vmatmul.mubr.f32.gmra.mrb[0].mxu0 %v1737
        %v2413 = vpop.f32.mrb[0].mxu0
        %v2414 = vadd.f32 %v2269, %v2413
        %v2415 = vpop.f32.mrb[0].mxu0
        %2416 = vdwg.mxu0
        %s2417 = scalar_lea.vmem %s4, 768
        %v2418 = vld [vmem:[%s2417] sm:$0xff]
        %v2419 = vld [vmem:[%s2417 + $0x8] sm:$0xff]
        %v2420 = vld [vmem:[%s2417 + $0x10] sm:$0xff]
        %v2421 = vld [vmem:[%s2417 + $0x18] sm:$0xff]
        %v2422 = vld [vmem:[%s2417 + $0x20] sm:$0xff]
        %v2423 = vld [vmem:[%s2417 + $0x28] sm:$0xff]
        %v2424 = vld [vmem:[%s2417 + $0x30] sm:$0xff]
        %v2425 = vld [vmem:[%s2417 + $0x38] sm:$0xff]
        %v2426 = vld [vmem:[%s2417 + $0x40] sm:$0xff]
        %v2427 = vld [vmem:[%s2417 + $0x48] sm:$0xff]
        %v2428 = vld [vmem:[%s2417 + $0x50] sm:$0xff]
        %v2429 = vld [vmem:[%s2417 + $0x58] sm:$0xff]
        %v2430 = vld [vmem:[%s2417 + $0x60] sm:$0xff]
        %v2431 = vld [vmem:[%s2417 + $0x68] sm:$0xff]
        %v2432 = vld [vmem:[%s2417 + $0x70] sm:$0xff]
        %v2433 = vld [vmem:[%s2417 + $0x78] sm:$0xff]
        %v2434 = vld [vmem:[%s2417 + $0x80] sm:$0xff]
        %v2435 = vld [vmem:[%s2417 + $0x88] sm:$0xff]
        %v2436 = vld [vmem:[%s2417 + $0x90] sm:$0xff]
        %v2437 = vld [vmem:[%s2417 + $0x98] sm:$0xff]
        %v2438 = vld [vmem:[%s2417 + $0xa0] sm:$0xff]
        %v2439 = vld [vmem:[%s2417 + $0xa8] sm:$0xff]
        %v2440 = vld [vmem:[%s2417 + $0xb0] sm:$0xff]
        %v2441 = vld [vmem:[%s2417 + $0xb8] sm:$0xff]
        %v2442 = vld [vmem:[%s2417 + $0xc0] sm:$0xff]
        %v2443 = vld [vmem:[%s2417 + $0xc8] sm:$0xff]
        %v2444 = vld [vmem:[%s2417 + $0xd0] sm:$0xff]
        %v2445 = vld [vmem:[%s2417 + $0xd8] sm:$0xff]
        %v2446 = vld [vmem:[%s2417 + $0xe0] sm:$0xff]
        %v2447 = vld [vmem:[%s2417 + $0xe8] sm:$0xff]
        %v2448 = vld [vmem:[%s2417 + $0xf0] sm:$0xff]
        %v2449 = vld [vmem:[%s2417 + $0xf8] sm:$0xff]
        %v2450 = vld [vmem:[%s2417 + $0x100] sm:$0xff]
        %v2451 = vld [vmem:[%s2417 + $0x108] sm:$0xff]
        %v2452 = vld [vmem:[%s2417 + $0x110] sm:$0xff]
        %v2453 = vld [vmem:[%s2417 + $0x118] sm:$0xff]
        %v2454 = vld [vmem:[%s2417 + $0x120] sm:$0xff]
        %v2455 = vld [vmem:[%s2417 + $0x128] sm:$0xff]
        %v2456 = vld [vmem:[%s2417 + $0x130] sm:$0xff]
        %v2457 = vld [vmem:[%s2417 + $0x138] sm:$0xff]
        %v2458 = vld [vmem:[%s2417 + $0x140] sm:$0xff]
        %v2459 = vld [vmem:[%s2417 + $0x148] sm:$0xff]
        %v2460 = vld [vmem:[%s2417 + $0x150] sm:$0xff]
        %v2461 = vld [vmem:[%s2417 + $0x158] sm:$0xff]
        %v2462 = vld [vmem:[%s2417 + $0x160] sm:$0xff]
        %v2463 = vld [vmem:[%s2417 + $0x168] sm:$0xff]
        %v2464 = vld [vmem:[%s2417 + $0x170] sm:$0xff]
        %v2465 = vld [vmem:[%s2417 + $0x178] sm:$0xff]
        %2466 = vmatprep.subr.mxu0 0.0
        %2467 = vmatpush1.msra.mxu0 %v2418
        %2468 = vmatprep.subr.mxu0 0.0
        %2469 = vmatpush1.msra.mxu0 %v2419
        %2470 = vmatprep.subr.mxu0 0.0
        %2471 = vmatpush1.msra.mxu0 %v2420
        %2472 = vmatprep.subr.mxu0 0.0
        %2473 = vmatpush1.msra.mxu0 %v2421
        %2474 = vmatprep.subr.mxu0 0.0
        %2475 = vmatpush1.msra.mxu0 %v2422
        %2476 = vmatprep.subr.mxu0 0.0
        %2477 = vmatpush1.msra.mxu0 %v2423
        %2478 = vmatprep.subr.mxu0 0.0
        %2479 = vmatpush1.msra.mxu0 %v2424
        %2480 = vmatprep.subr.mxu0 0.0
        %2481 = vmatpush1.msra.mxu0 %v2425
        %2482 = vmatprep.subr.mxu0 0.0
        %2483 = vmatpush1.msra.mxu0 %v2426
        %2484 = vmatprep.subr.mxu0 0.0
        %2485 = vmatpush1.msra.mxu0 %v2427
        %2486 = vmatprep.subr.mxu0 0.0
        %2487 = vmatpush1.msra.mxu0 %v2428
        %2488 = vmatprep.subr.mxu0 0.0
        %2489 = vmatpush1.msra.mxu0 %v2429
        %2490 = vmatprep.subr.mxu0 0.0
        %2491 = vmatpush1.msra.mxu0 %v2430
        %2492 = vmatprep.subr.mxu0 0.0
        %2493 = vmatpush1.msra.mxu0 %v2431
        %2494 = vmatprep.subr.mxu0 0.0
        %2495 = vmatpush1.msra.mxu0 %v2432
        %2496 = vmatprep.subr.mxu0 0.0
        %2497 = vmatpush1.msra.mxu0 %v2433
        %2498 = vmatprep.subr.mxu0 0.0
        %2499 = vmatpush1.msra.mxu0 %v2434
        %2500 = vmatprep.subr.mxu0 0.0
        %2501 = vmatpush1.msra.mxu0 %v2435
        %2502 = vmatprep.subr.mxu0 0.0
        %2503 = vmatpush1.msra.mxu0 %v2436
        %2504 = vmatprep.subr.mxu0 0.0
        %2505 = vmatpush1.msra.mxu0 %v2437
        %2506 = vmatprep.subr.mxu0 0.0
        %2507 = vmatpush1.msra.mxu0 %v2438
        %2508 = vmatprep.subr.mxu0 0.0
        %2509 = vmatpush1.msra.mxu0 %v2439
        %2510 = vmatprep.subr.mxu0 0.0
        %2511 = vmatpush1.msra.mxu0 %v2440
        %2512 = vmatprep.subr.mxu0 0.0
        %2513 = vmatpush1.msra.mxu0 %v2441
        %2514 = vmatprep.subr.mxu0 0.0
        %2515 = vmatpush1.msra.mxu0 %v2442
        %2516 = vmatprep.subr.mxu0 0.0
        %2517 = vmatpush1.msra.mxu0 %v2443
        %2518 = vmatprep.subr.mxu0 0.0
        %2519 = vmatpush1.msra.mxu0 %v2444
        %2520 = vmatprep.subr.mxu0 0.0
        %2521 = vmatpush1.msra.mxu0 %v2445
        %2522 = vmatprep.subr.mxu0 0.0
        %2523 = vmatpush1.msra.mxu0 %v2446
        %2524 = vmatprep.subr.mxu0 0.0
        %2525 = vmatpush1.msra.mxu0 %v2447
        %2526 = vmatprep.subr.mxu0 0.0
        %2527 = vmatpush1.msra.mxu0 %v2448
        %2528 = vmatprep.subr.mxu0 0.0
        %2529 = vmatpush1.msra.mxu0 %v2449
        %2530 = vmatprep.mubr.f32.mxu0 %v1584
        %2531 = vmatmul.mubr.f32.gmra.mrb[0].mxu0 %v1672
        %v2532 = vpop.f32.mrb[0].mxu0
        %v2533 = vadd.f32 0.0, %v2532
        %v2534 = vpop.f32.mrb[0].mxu0
        %2535 = vmatprep.mubr.f32.mxu0 %v1585
        %2536 = vmatmul.mubr.f32.gmra.mrb[0].mxu0 %v1628
        %v2537 = vpop.f32.mrb[0].mxu0
        %v2538 = vadd.f32 0.0, %v2537
        %v2539 = vpop.f32.mrb[0].mxu0
        %2540 = vmatprep.mubr.f32.mxu0 %v1586
        %2541 = vmatmul.mubr.f32.gmra.mrb[0].mxu0 %v1673
        %v2542 = vpop.f32.mrb[0].mxu0
        %v2543 = vadd.f32 0.0, %v2542
        %v2544 = vpop.f32.mrb[0].mxu0
        %2545 = vmatprep.mubr.f32.mxu0 %v1587
        %2546 = vmatmul.mubr.f32.gmra.mrb[0].mxu0 %v1631
        %v2547 = vpop.f32.mrb[0].mxu0
        %v2548 = vadd.f32 0.0, %v2547
        %v2549 = vpop.f32.mrb[0].mxu0
        %2550 = vmatprep.mubr.f32.mxu0 %v1588
        %2551 = vmatmul.mubr.f32.gmra.mrb[0].mxu0 %v1674
        %v2552 = vpop.f32.mrb[0].mxu0
        %v2553 = vadd.f32 0.0, %v2552
        %v2554 = vpop.f32.mrb[0].mxu0
        %2555 = vmatprep.mubr.f32.mxu0 %v1589
        %2556 = vmatmul.mubr.f32.gmra.mrb[0].mxu0 %v1634
        %v2557 = vpop.f32.mrb[0].mxu0
        %v2558 = vadd.f32 0.0, %v2557
        %v2559 = vpop.f32.mrb[0].mxu0
        %2560 = vmatprep.mubr.f32.mxu0 %v1590
        %2561 = vmatmul.mubr.f32.gmra.mrb[0].mxu0 %v1675
        %v2562 = vpop.f32.mrb[0].mxu0
        %v2563 = vadd.f32 0.0, %v2562
        %v2564 = vpop.f32.mrb[0].mxu0
        %2565 = vmatprep.mubr.f32.mxu0 %v1591
        %2566 = vmatmul.mubr.f32.gmra.mrb[0].mxu0 %v1637
        %v2567 = vpop.f32.mrb[0].mxu0
        %v2568 = vadd.f32 0.0, %v2567
        %v2569 = vpop.f32.mrb[0].mxu0
        %2570 = vmatprep.mubr.f32.mxu0 %v1592
        %2571 = vmatmul.mubr.f32.gmra.mrb[0].mxu0 %v1676
        %v2572 = vpop.f32.mrb[0].mxu0
        %v2573 = vadd.f32 0.0, %v2572
        %v2574 = vpop.f32.mrb[0].mxu0
        %2575 = vmatprep.mubr.f32.mxu0 %v1593
        %2576 = vmatmul.mubr.f32.gmra.mrb[0].mxu0 %v1640
        %v2577 = vpop.f32.mrb[0].mxu0
        %v2578 = vadd.f32 0.0, %v2577
        %v2579 = vpop.f32.mrb[0].mxu0
        %2580 = vmatprep.mubr.f32.mxu0 %v1594
        %2581 = vmatmul.mubr.f32.gmra.mrb[0].mxu0 %v1677
        %v2582 = vpop.f32.mrb[0].mxu0
        %v2583 = vadd.f32 0.0, %v2582
        %v2584 = vpop.f32.mrb[0].mxu0
        %2585 = vmatprep.mubr.f32.mxu0 %v1595
        %2586 = vmatmul.mubr.f32.gmra.mrb[0].mxu0 %v1643
        %v2587 = vpop.f32.mrb[0].mxu0
        %v2588 = vadd.f32 0.0, %v2587
        %v2589 = vpop.f32.mrb[0].mxu0
        %2590 = vmatprep.mubr.f32.mxu0 %v1596
        %2591 = vmatmul.mubr.f32.gmra.mrb[0].mxu0 %v1678
        %v2592 = vpop.f32.mrb[0].mxu0
        %v2593 = vadd.f32 0.0, %v2592
        %v2594 = vpop.f32.mrb[0].mxu0
        %2595 = vmatprep.mubr.f32.mxu0 %v1597
        %2596 = vmatmul.mubr.f32.gmra.mrb[0].mxu0 %v1646
        %v2597 = vpop.f32.mrb[0].mxu0
        %v2598 = vadd.f32 0.0, %v2597
        %v2599 = vpop.f32.mrb[0].mxu0
        %2600 = vmatprep.mubr.f32.mxu0 %v1598
        %2601 = vmatmul.mubr.f32.gmra.mrb[0].mxu0 %v1679
        %v2602 = vpop.f32.mrb[0].mxu0
        %v2603 = vadd.f32 0.0, %v2602
        %v2604 = vpop.f32.mrb[0].mxu0
        %2605 = vmatprep.mubr.f32.mxu0 %v1599
        %2606 = vmatmul.mubr.f32.gmra.mrb[0].mxu0 %v1649
        %v2607 = vpop.f32.mrb[0].mxu0
        %v2608 = vadd.f32 0.0, %v2607
        %v2609 = vpop.f32.mrb[0].mxu0
        %2610 = vdwg.mxu0
        %2611 = vmatprep.subr.mxu0 0.0
        %2612 = vmatpush1.msra.mxu0 %v2450
        %2613 = vmatprep.subr.mxu0 0.0
        %2614 = vmatpush1.msra.mxu0 %v2451
        %2615 = vmatprep.subr.mxu0 0.0
        %2616 = vmatpush1.msra.mxu0 %v2452
        %2617 = vmatprep.subr.mxu0 0.0
        %2618 = vmatpush1.msra.mxu0 %v2453
        %2619 = vmatprep.subr.mxu0 0.0
        %2620 = vmatpush1.msra.mxu0 %v2454
        %2621 = vmatprep.subr.mxu0 0.0
        %2622 = vmatpush1.msra.mxu0 %v2455
        %2623 = vmatprep.subr.mxu0 0.0
        %2624 = vmatpush1.msra.mxu0 %v2456
        %2625 = vmatprep.subr.mxu0 0.0
        %2626 = vmatpush1.msra.mxu0 %v2457
        %2627 = vmatprep.subr.mxu0 0.0
        %2628 = vmatpush1.msra.mxu0 %v2458
        %2629 = vmatprep.subr.mxu0 0.0
        %2630 = vmatpush1.msra.mxu0 %v2459
        %2631 = vmatprep.subr.mxu0 0.0
        %2632 = vmatpush1.msra.mxu0 %v2460
        %2633 = vmatprep.subr.mxu0 0.0
        %2634 = vmatpush1.msra.mxu0 %v2461
        %2635 = vmatprep.subr.mxu0 0.0
        %2636 = vmatpush1.msra.mxu0 %v2462
        %2637 = vmatprep.subr.mxu0 0.0
        %2638 = vmatpush1.msra.mxu0 %v2463
        %2639 = vmatprep.subr.mxu0 0.0
        %2640 = vmatpush1.msra.mxu0 %v2464
        %2641 = vmatprep.subr.mxu0 0.0
        %2642 = vmatpush1.msra.mxu0 %v2465
        %2643 = vmatprep.subr.mxu0 0.0
        %2644 = vmatpush1.msra.mxu0 0.0
        %2645 = vmatprep.subr.mxu0 0.0
        %2646 = vmatpush1.msra.mxu0 0.0
        %2647 = vmatprep.subr.mxu0 0.0
        %2648 = vmatpush1.msra.mxu0 0.0
        %2649 = vmatprep.subr.mxu0 0.0
        %2650 = vmatpush1.msra.mxu0 0.0
        %2651 = vmatprep.subr.mxu0 0.0
        %2652 = vmatpush1.msra.mxu0 0.0
        %2653 = vmatprep.subr.mxu0 0.0
        %2654 = vmatpush1.msra.mxu0 0.0
        %2655 = vmatprep.subr.mxu0 0.0
        %2656 = vmatpush1.msra.mxu0 0.0
        %2657 = vmatprep.subr.mxu0 0.0
        %2658 = vmatpush1.msra.mxu0 0.0
        %2659 = vmatprep.subr.mxu0 0.0
        %2660 = vmatpush1.msra.mxu0 0.0
        %2661 = vmatprep.subr.mxu0 0.0
        %2662 = vmatpush1.msra.mxu0 0.0
        %2663 = vmatprep.subr.mxu0 0.0
        %2664 = vmatpush1.msra.mxu0 0.0
        %2665 = vmatprep.subr.mxu0 0.0
        %2666 = vmatpush1.msra.mxu0 0.0
        %2667 = vmatprep.subr.mxu0 0.0
        %2668 = vmatpush1.msra.mxu0 0.0
        %2669 = vmatprep.subr.mxu0 0.0
        %2670 = vmatpush1.msra.mxu0 0.0
        %2671 = vmatprep.subr.mxu0 0.0
        %2672 = vmatpush1.msra.mxu0 0.0
        %2673 = vmatprep.subr.mxu0 0.0
        %2674 = vmatpush1.msra.mxu0 0.0
        %2675 = vmatprep.mubr.f32.mxu0 0.0
        %2676 = vmatmul.mubr.f32.gmra.mrb[0].mxu0 %v1688
        %v2677 = vpop.f32.mrb[0].mxu0
        %v2678 = vadd.f32 %v2533, %v2677
        %v2679 = vpop.f32.mrb[0].mxu0
        %2680 = vmatprep.mubr.f32.mxu0 0.0
        %2681 = vmatmul.mubr.f32.gmra.mrb[0].mxu0 %v1732
        %v2682 = vpop.f32.mrb[0].mxu0
        %v2683 = vadd.f32 %v2538, %v2682
        %v2684 = vpop.f32.mrb[0].mxu0
        %2685 = vmatprep.mubr.f32.mxu0 0.0
        %2686 = vmatmul.mubr.f32.gmra.mrb[0].mxu0 %v1691
        %v2687 = vpop.f32.mrb[0].mxu0
        %v2688 = vadd.f32 %v2543, %v2687
        %v2689 = vpop.f32.mrb[0].mxu0
        %2690 = vmatprep.mubr.f32.mxu0 0.0
        %2691 = vmatmul.mubr.f32.gmra.mrb[0].mxu0 %v1733
        %v2692 = vpop.f32.mrb[0].mxu0
        %v2693 = vadd.f32 %v2548, %v2692
        %v2694 = vpop.f32.mrb[0].mxu0
        %2695 = vmatprep.mubr.f32.mxu0 0.0
        %2696 = vmatmul.mubr.f32.gmra.mrb[0].mxu0 %v1694
        %v2697 = vpop.f32.mrb[0].mxu0
        %v2698 = vadd.f32 %v2553, %v2697
        %v2699 = vpop.f32.mrb[0].mxu0
        %2700 = vmatprep.mubr.f32.mxu0 0.0
        %2701 = vmatmul.mubr.f32.gmra.mrb[0].mxu0 %v1734
        %v2702 = vpop.f32.mrb[0].mxu0
        %v2703 = vadd.f32 %v2558, %v2702
        %v2704 = vpop.f32.mrb[0].mxu0
        %2705 = vmatprep.mubr.f32.mxu0 0.0
        %2706 = vmatmul.mubr.f32.gmra.mrb[0].mxu0 %v1697
        %v2707 = vpop.f32.mrb[0].mxu0
        %v2708 = vadd.f32 %v2563, %v2707
        %v2709 = vpop.f32.mrb[0].mxu0
        %2710 = vmatprep.mubr.f32.mxu0 0.0
        %2711 = vmatmul.mubr.f32.gmra.mrb[0].mxu0 %v1735
        %v2712 = vpop.f32.mrb[0].mxu0
        %v2713 = vadd.f32 %v2568, %v2712
        %v2714 = vpop.f32.mrb[0].mxu0
        %2715 = vmatprep.mubr.f32.mxu0 0.0
        %2716 = vmatmul.mubr.f32.gmra.mrb[0].mxu0 %v1700
        %v2717 = vpop.f32.mrb[0].mxu0
        %v2718 = vadd.f32 %v2573, %v2717
        %v2719 = vpop.f32.mrb[0].mxu0
        %2720 = vmatprep.mubr.f32.mxu0 0.0
        %2721 = vmatmul.mubr.f32.gmra.mrb[0].mxu0 %v1736
        %v2722 = vpop.f32.mrb[0].mxu0
        %v2723 = vadd.f32 %v2578, %v2722
        %v2724 = vpop.f32.mrb[0].mxu0
        %2725 = vmatprep.mubr.f32.mxu0 0.0
        %2726 = vmatmul.mubr.f32.gmra.mrb[0].mxu0 %v1703
        %v2727 = vpop.f32.mrb[0].mxu0
        %v2728 = vadd.f32 %v2583, %v2727
        %v2729 = vpop.f32.mrb[0].mxu0
        %2730 = vmatprep.mubr.f32.mxu0 0.0
        %2731 = vmatmul.mubr.f32.gmra.mrb[0].mxu0 %v1737
        %v2732 = vpop.f32.mrb[0].mxu0
        %v2733 = vadd.f32 %v2588, %v2732
        %v2734 = vpop.f32.mrb[0].mxu0
        %2735 = vmatprep.mubr.f32.mxu0 0.0
        %2736 = vmatmul.mubr.f32.gmra.mrb[0].mxu0 %v1706
        %v2737 = vpop.f32.mrb[0].mxu0
        %v2738 = vadd.f32 %v2593, %v2737
        %v2739 = vpop.f32.mrb[0].mxu0
        %2740 = vmatprep.mubr.f32.mxu0 0.0
        %2741 = vmatmul.mubr.f32.gmra.mrb[0].mxu0 %v1738
        %v2742 = vpop.f32.mrb[0].mxu0
        %v2743 = vadd.f32 %v2598, %v2742
        %v2744 = vpop.f32.mrb[0].mxu0
        %2745 = vmatprep.mubr.f32.mxu0 0.0
        %2746 = vmatmul.mubr.f32.gmra.mrb[0].mxu0 %v1709
        %v2747 = vpop.f32.mrb[0].mxu0
        %v2748 = vadd.f32 %v2603, %v2747
        %v2749 = vpop.f32.mrb[0].mxu0
        %2750 = vmatprep.mubr.f32.mxu0 0.0
        %2751 = vmatmul.mubr.f32.gmra.mrb[0].mxu0 %v1739
        %v2752 = vpop.f32.mrb[0].mxu0
        %v2753 = vadd.f32 %v2608, %v2752
        %v2754 = vpop.f32.mrb[0].mxu0
        %2755 = vdwg.mxu0
        %v2756 = vadd.f32 %v2339, %v2678
        %v2757 = vadd.f32 %v2344, %v2683
        %v2758 = vadd.f32 %v2349, %v2688
        %v2759 = vadd.f32 %v2354, %v2693
        %v2760 = vadd.f32 %v2359, %v2698
        %v2761 = vadd.f32 %v2364, %v2703
        %v2762 = vadd.f32 %v2369, %v2708
        %v2763 = vadd.f32 %v2374, %v2713
        %v2764 = vadd.f32 %v2379, %v2718
        %v2765 = vadd.f32 %v2384, %v2723
        %v2766 = vadd.f32 %v2389, %v2728
        %v2767 = vadd.f32 %v2394, %v2733
        %v2768 = vadd.f32 %v2399, %v2738
        %v2769 = vadd.f32 %v2404, %v2743
        %v2770 = vadd.f32 %v2409, %v2748
        %v2771 = vadd.f32 %v2414, %v2753
        %v2772 = vld [vmem:[%s5 + $0x1] sm:$0x1]
        %v2773 = vlaneseq
        %v2774 = vshrl.u32 %v2773, 7
        %v2775 = vsub.s32 0, %v2774
        %v2776 = vrot.slane %v2772, %v2775
        %v2777 = vmul.f32 %v2756, %v2776
        %v2778 = vmul.f32 %v2757, %v2776
        %v2779 = vmul.f32 %v2758, %v2776
        %v2780 = vmul.f32 %v2759, %v2776
        %v2781 = vmul.f32 %v2760, %v2776
        %v2782 = vmul.f32 %v2761, %v2776
        %v2783 = vmul.f32 %v2762, %v2776
        %v2784 = vmul.f32 %v2763, %v2776
        %v2785 = vmul.f32 %v2764, %v2776
        %v2786 = vmul.f32 %v2765, %v2776
        %v2787 = vmul.f32 %v2766, %v2776
        %v2788 = vmul.f32 %v2767, %v2776
        %v2789 = vmul.f32 %v2768, %v2776
        %v2790 = vmul.f32 %v2769, %v2776
        %v2791 = vmul.f32 %v2770, %v2776
        %v2792 = vmul.f32 %v2771, %v2776
        %v2793 = vld [vmem:[%s6 + $0x1] sm:$0x1]
        %v2794 = vlaneseq
        %v2795 = vshrl.u32 %v2794, 7
        %v2796 = vsub.s32 0, %v2795
        %v2797 = vrot.slane %v2793, %v2796
        %v2798 = vadd.f32 %v2777, %v2797
        %v2799 = vadd.f32 %v2778, %v2797
        %v2800 = vadd.f32 %v2779, %v2797
        %v2801 = vadd.f32 %v2780, %v2797
        %v2802 = vadd.f32 %v2781, %v2797
        %v2803 = vadd.f32 %v2782, %v2797
        %v2804 = vadd.f32 %v2783, %v2797
        %v2805 = vadd.f32 %v2784, %v2797
        %v2806 = vadd.f32 %v2785, %v2797
        %v2807 = vadd.f32 %v2786, %v2797
        %v2808 = vadd.f32 %v2787, %v2797
        %v2809 = vadd.f32 %v2788, %v2797
        %v2810 = vadd.f32 %v2789, %v2797
        %v2811 = vadd.f32 %v2790, %v2797
        %v2812 = vadd.f32 %v2791, %v2797
        %v2813 = vadd.f32 %v2792, %v2797
        %v2814 = vmax.f32 %v2798, 0.0
        %v2815 = vmax.f32 %v2799, 0.0
        %v2816 = vmax.f32 %v2800, 0.0
        %v2817 = vmax.f32 %v2801, 0.0
        %v2818 = vmax.f32 %v2802, 0.0
        %v2819 = vmax.f32 %v2803, 0.0
        %v2820 = vmax.f32 %v2804, 0.0
        %v2821 = vmax.f32 %v2805, 0.0
        %v2822 = vmax.f32 %v2806, 0.0
        %v2823 = vmax.f32 %v2807, 0.0
        %v2824 = vmax.f32 %v2808, 0.0
        %v2825 = vmax.f32 %v2809, 0.0
        %v2826 = vmax.f32 %v2810, 0.0
        %v2827 = vmax.f32 %v2811, 0.0
        %v2828 = vmax.f32 %v2812, 0.0
        %v2829 = vmax.f32 %v2813, 0.0
        %2830 = vst [vmem:[%s394] sm:$0xff] %v2814
        %2831 = vst [vmem:[%s394 + $0x8] sm:$0xff] %v2815
        %2832 = vst [vmem:[%s394 + $0x10] sm:$0xff] %v2816
        %2833 = vst [vmem:[%s394 + $0x18] sm:$0xff] %v2817
        %2834 = vst [vmem:[%s394 + $0x20] sm:$0xff] %v2818
        %2835 = vst [vmem:[%s394 + $0x28] sm:$0xff] %v2819
        %2836 = vst [vmem:[%s394 + $0x30] sm:$0xff] %v2820
        %2837 = vst [vmem:[%s394 + $0x38] sm:$0xff] %v2821
        %2838 = vst [vmem:[%s394 + $0x40] sm:$0xff] %v2822
        %2839 = vst [vmem:[%s394 + $0x48] sm:$0xff] %v2823
        %2840 = vst [vmem:[%s394 + $0x50] sm:$0xff] %v2824
        %2841 = vst [vmem:[%s394 + $0x58] sm:$0xff] %v2825
        %2842 = vst [vmem:[%s394 + $0x60] sm:$0xff] %v2826
        %2843 = vst [vmem:[%s394 + $0x68] sm:$0xff] %v2827
        %2844 = vst [vmem:[%s394 + $0x70] sm:$0xff] %v2828
        %2845 = vst [vmem:[%s394 + $0x78] sm:$0xff] %v2829
        %s2846 = sand.u32 %s227, 1
        %s2847 = scalar_lea.sflag [#allocation3], %s2846
        %s2848 = sand.u32 %s227, 1
        %s2849 = smul.addr %s2848, 128
        %s2850 = scalar_lea.vmem [#allocation2], %s2849
        // Predicated region
        $region49: #{tpu_custom_call.1} parent=47 // pred_check
          %p2851 = pneg %p237
        $region50: #{tpu_custom_call.1} parent=47 // pred_check_branch
          %2853 = sbr.rel (%p2851) target = $region52
        $region51: #{tpu_custom_call.1} parent=47 // pred_region
          %s2854 = smul.u32 8, %s26
          %s2856 = ssub.s32 2048, 2048
          %2857 = vsyncadd %s2847, %s2856
          %s2858 = smul.addr %s2854, 2
          %s2859 = smul.addr %s25, 32
          %s2860 = sadd.s32 %s2858, %s2859
          %s2861 = smul.addr %s2860, 128
          %s2862 = scalar_lea.hbm %s7, %s2861
          %s2863 = sshll.u32 %s2850, 4
          %s2864 = int_to_ptr.vmem [resolvable:$true] %s2863
          %2869 = dma.vmem_to_hbm [thread:$0]  %s2864, 2048, %s2862, %s2847, 128, 128, 8
        $region52: #{tpu_custom_call.1} parent=47 // pred_fallthru
          _
      $region48: #{tpu_custom_call.1} parent=5 // pred_fallthru
        _
      %p2870 = scmp.le.s32.totalorder 2, %s16
      // Predicated region
      $region53: #{tpu_custom_call.1} parent=5 // pred_check
        %p2871 = pneg %p2870
      $region54: #{tpu_custom_call.1} parent=5 // pred_check_branch
        %2873 = sbr.rel (%p2871) target = $region56
      $region55: #{tpu_custom_call.1} parent=5 // pred_region
        %s2874 = ssub.s32 %s16, 2
        // Predicated region
        $region57: #{tpu_custom_call.1} parent=55 // pred_check
          %p2875 = pneg %p243
        $region58: #{tpu_custom_call.1} parent=55 // pred_check_branch
          %2877 = sbr.rel (%p2875) target = $region60
        $region59: #{tpu_custom_call.1} parent=55 // pred_region
          %s2878 = sand.u32 %s228, 1
          %s2879 = scalar_lea.sflag [#allocation3], %s2878
          %s2880 = sand.u32 %s228, 1
          %s2881 = smul.addr %s2880, 128
          %s2882 = scalar_lea.vmem [#allocation2], %s2881
          %2883 = dma.done %s2879, 2048
        $region60: #{tpu_custom_call.1} parent=55 // pred_fallthru
          _
      $region56: #{tpu_custom_call.1} parent=5 // pred_fallthru
        _
    $region6: #{tpu_custom_call.1} parent=1 // loop_footer
      %s20 = sadd.s32 1, %s16
    $region7: #{tpu_custom_call.1} parent=1 // loop_footer_branch
      %15 = sbr.rel target = $region3
    $region8: #{tpu_custom_call.1} parent=1 // loop_exit
      _
    %2884 = vsyncpa [#allocation3], 1
    %s2885 = scalar_lea.sflag [#allocation3], 1
    %2886 = vsyncpa %s2885, 1

</llo_original>
